<compile_context>
chip_gen: v6e
topology: v6e:2x2x1
jax: 0.10.0
libtpu: 0.0.40
codegen_flags: <defaults>
</compile_context>

<pallas_src>
import functools

import jax
import jax.numpy as jnp
import numpy as np
from jax.experimental import pallas as pl
from jax.experimental.pallas import tpu as pltpu


def _seq2seq_kernel(S, Cin, Cout, Hc, *refs):
    """refs = (x, enc_wh, dec_w, vec[, enc_wx][, out_w, out_b], out)."""
    it = iter(refs)
    x_ref = next(it)
    enc_wh_ref = next(it)
    dec_w_ref = next(it)
    vec_ref = next(it)
    enc_wx_ref = next(it) if Cin > 1 else None
    out_w_ref = next(it) if Cout > 1 else None
    out_b_ref = next(it) if Cout > 1 else None
    o_ref = next(it)

    TP = x_ref.shape[-1]                 # lane-dense pixel tile
    H2 = 2 * Hc

    # One DMA carries every per-channel vector; unpack with static slices.
    #  col0: enc bias | col1: [enc BN scale; shift] | col2: dec bias
    #  col3: [dec BN scale; shift] | col4: enc_wx column (Cin==1)
    #  col5: [out_w column; out_b]  (Cout==1)
    vec = vec_ref[...]
    enc_b, enc_sc, enc_sh = vec[:, 0:1], vec[:Hc, 1:2], vec[Hc:, 1:2]
    dec_b, dec_sc, dec_sh = vec[:, 2:3], vec[:Hc, 3:4], vec[Hc:, 3:4]

    # Hoisted lane-broadcasts: JAX does not CSE broadcast_in_dim, so doing
    # these inside the unrolled S-loop would re-emit them every timestep.
    enc_b_b = jnp.broadcast_to(enc_b, (H2, TP))
    enc_sc_b = jnp.broadcast_to(enc_sc, (Hc, TP))
    enc_sh_b = jnp.broadcast_to(enc_sh, (Hc, TP))

    enc_wh = enc_wh_ref[...]                              # (2*Hc, Hc)
    if Cin == 1:
        enc_wx_b = jnp.broadcast_to(vec[:, 4:5], (H2, TP))
    else:
        enc_wx = enc_wx_ref[...]                          # (2*Hc, Cin)

    # ---------------- Encoder: ConvGRUCell over the sequence -----------------
    # Update-gate rows of all weights/biases were pre-scaled by 0.5 in the
    # wrapper, so sigmoid(u) == 0.5*tanh(u/2) + 0.5 falls out of ONE fused tanh
    # over the whole (2*Hc, TP) gate block (single EUP stream per step).
    h = None
    for t in range(S):                                    # S is small: static unroll
        if Cin == 1:
            x_t = x_ref[pl.ds(t, 1), :]                   # (1, TP) lane-dense row
            x_gates = enc_wx_b * x_t                      # VPU; no K=1 MXU pass
        else:
            x_gates = jnp.dot(enc_wx, x_ref[t],
                              preferred_element_type=jnp.float32)
        if t == 0:                                        # h0 == 0: skip Wh matmul
            gates = x_gates + enc_b_b
        else:
            gates = (x_gates
                     + jnp.dot(enc_wh, h, preferred_element_type=jnp.float32)
                     + enc_b_b)
        tg = jnp.tanh(gates)                              # one EUP pass for z and n
        z = 0.5 * tg[:Hc, :] + 0.5                        # == sigmoid(update logits)
        n = tg[Hc:, :]                                    # candidate state
        # (reset gate of the torch cell is computed-but-unused: elided.)
        h = z * n if t == 0 else h + z * (n - h)          # FMA-free GRU blend
        h = h * enc_sc_b + enc_sh_b                       # BatchNorm2d (eval affine)
        # Dropout2d: eval-mode identity

    enc_last = h

    # ------------- Decoder: one ConvGRUCell step, input == hidden ------------
    # Wx and Wh folded into a single weight (h@Wx + h@Wh == h@(Wx+Wh)).
    g = (jnp.dot(dec_w_ref[...], h, preferred_element_type=jnp.float32)
         + dec_b)                                         # (2*Hc, TP)
    tg = jnp.tanh(g)
    z = 0.5 * tg[:Hc, :] + 0.5
    n = tg[Hc:, :]
    hd = h + z * (n - h)
    hd = hd * dec_sc + dec_sh                             # BatchNorm2d (eval affine)
    hd = hd + enc_last                                    # t == 0 skip connection
    # Dropout2d: eval-mode identity

    # ---------------- Final 1x1 conv (Hc -> Cout), lane-dense store ----------
    if Cout == 1:
        ow = vec[:Hc, 5:6]                                # (Hc, 1)
        ob = vec[Hc:Hc + 1, 5:6]                          # (1, 1)
        o = jnp.sum(hd * ow, axis=0, keepdims=True) + ob  # VPU mul + sublane reduce
    else:
        o = (jnp.dot(out_w_ref[...], hd, preferred_element_type=jnp.float32)
             + out_b_ref[...])
    o_ref[...] = o


def _num_tensorcores():
    """Best-effort TensorCores-per-chip (only steers the grid-splitting heuristic)."""
    try:
        kind = jax.devices()[0].device_kind.lower()
    except Exception:
        return 1
    return 2 if any(t in kind for t in ("v7", "tpu7", "v4", "v5p")) else 1


def _pick_tile_p(HW, B, n_cores, max_tile=8192):
    """Largest lane-dense (multiple-of-128) divisor of HW, capped at max_tile.

    Single-TC chips (v5e/v6e) get the fewest grid steps; on multi-TC chips the
    grid is kept >= 2 steps so both TensorCores get work under
    dimension_semantics=('parallel', 'parallel').
    """
    def largest_div(limit):
        best, d, lim = 0, 128, min(HW, limit)
        while d <= lim:
            if HW % d == 0:
                best = d
            d += 128
        return best

    tile = largest_div(max_tile)
    if tile == 0:
        # TODO(synk): pad HW to a multiple of 128 instead of a lane-masked tile.
        return HW
    if n_cores >= 2 and B * (HW // tile) < 2 and tile > 128:
        smaller = largest_div(tile - 1)
        if smaller:
            tile = smaller
    return tile


def seq2seq_autoencoder(x, params, tile_p=None, max_tile=8192):
    """x: (B, S, Cin, H, W) float32  ->  (B, 1, Cout, H, W)  (eval semantics)."""
    B, S, Cin, H, W = x.shape
    enc_w = params["enc_w"]                 # (3*Hc, Cin+Hc) torch conv weight (k=1)
    Hc = enc_w.shape[0] // 3
    Cout = params["out_w"].shape[0]
    HW = H * W
    if tile_p is None:
        tile_p = _pick_tile_p(HW, B, _num_tensorcores(), max_tile)
    assert HW % tile_p == 0, "H*W must be divisible by tile_p"

    f32 = jnp.float32

    def drop_reset(w):          # [update; reset; new] rows -> [update; new]
        return jnp.concatenate([w[:Hc], w[2 * Hc:]], axis=0)

    def halve_update(w):        # fold the 0.5 of sigmoid-via-tanh into z rows
        return jnp.concatenate([0.5 * w[:Hc], w[Hc:]], axis=0)

    enc_w2 = halve_update(drop_reset(enc_w.astype(f32)))          # (2*Hc, Cin+Hc)
    enc_wx = enc_w2[:, :Cin]                                      # (2*Hc, Cin)
    enc_wh = enc_w2[:, Cin:]                                      # (2*Hc, Hc)
    enc_b = halve_update(drop_reset(params["enc_b"].reshape(-1, 1).astype(f32)))

    dec_w2 = drop_reset(params["dec_w"].astype(f32))              # (2*Hc, 2*Hc)
    dec_w = halve_update(dec_w2[:, :Hc] + dec_w2[:, Hc:])         # fold Wx + Wh
    dec_b = halve_update(drop_reset(params["dec_b"].reshape(-1, 1).astype(f32)))

    def bn_affine(p):           # eval-mode BatchNorm -> per-channel scale/shift
        scale = p["gamma"].astype(f32) / jnp.sqrt(p["var"].astype(f32) + 1e-5)
        shift = p["beta"].astype(f32) - p["mean"].astype(f32) * scale
        return scale.reshape(-1, 1), shift.reshape(-1, 1)

    enc_sc, enc_sh = bn_affine(params["enc_bn"])
    dec_sc, dec_sh = bn_affine(params["dec_bn"])

    out_w = params["out_w"].astype(f32)                           # (Cout, Hc)
    out_b = params["out_b"].reshape(-1, 1).astype(f32)            # (Cout, 1)

    # Pack every per-channel (C,1) vector into ONE (2*Hc, 6) array: one DMA
    # instead of ~8 lane-padded descriptors.
    zcol = jnp.zeros((2 * Hc, 1), f32)
    col4 = enc_wx if Cin == 1 else zcol
    if Cout == 1:
        col5 = jnp.concatenate([out_w.reshape(Hc, 1), out_b.reshape(1, 1),
                                jnp.zeros((Hc - 1, 1), f32)], axis=0)
    else:
        col5 = zcol
    vec = jnp.concatenate(
        [enc_b, jnp.concatenate([enc_sc, enc_sh], axis=0),
         dec_b, jnp.concatenate([dec_sc, dec_sh], axis=0), col4, col5], axis=1)

    # Batch is a grid axis (no wrapper transpose); Cin==1 is squeezed from the block.
    if Cin == 1:
        x_arr = x.reshape(B, S, HW).astype(f32)
        x_spec = pl.BlockSpec((None, S, tile_p), lambda b, i: (b, 0, i))
    else:
        x_arr = x.reshape(B, S, Cin, HW).astype(f32)
        x_spec = pl.BlockSpec((None, S, Cin, tile_p), lambda b, i: (b, 0, 0, i))

    def full_spec(shape):
        nd = len(shape)
        return pl.BlockSpec(shape, lambda b, i, _nd=nd: (0,) * _nd)

    inputs = [x_arr, enc_wh, dec_w, vec]
    in_specs = [x_spec, full_spec(enc_wh.shape), full_spec(dec_w.shape),
                full_spec(vec.shape)]
    if Cin > 1:
        inputs.append(enc_wx)
        in_specs.append(full_spec(enc_wx.shape))
    if Cout > 1:
        inputs += [out_w, out_b]
        in_specs += [full_spec(out_w.shape), full_spec(out_b.shape)]

    out_specs = pl.BlockSpec((None, Cout, tile_p), lambda b, i: (b, 0, i))

    cp_kwargs = dict(dimension_semantics=("parallel", "parallel"))
    if tile_p > 2048:
        # Large (v7x-style) tiles: lift the scoped-VMEM cap (default 16-32 MiB).
        cp_kwargs["vmem_limit_bytes"] = 56 * 1024 * 1024

    out_flat = pl.pallas_call(
        functools.partial(_seq2seq_kernel, S, Cin, Cout, Hc),
        out_shape=jax.ShapeDtypeStruct((B, Cout, HW), f32),
        grid=(B, HW // tile_p),
        in_specs=in_specs,
        out_specs=out_specs,
        compiler_params=pltpu.CompilerParams(**cp_kwargs),
    )(*inputs)

    # (B, Cout, HW) -> (B, 1, Cout, H, W)   (matches torch output.unsqueeze(1))
    return out_flat.reshape(B, Cout, H, W)[:, None]


def reference_forward(x, params):
    """Pure-JAX reference mirroring the PyTorch forward (eval semantics)."""
    B, S, Cin, H, W = x.shape
    enc_w = params["enc_w"]
    Hc = enc_w.shape[0] // 3
    P = B * H * W
    hi = jax.lax.Precision.HIGHEST
    x_flat = jnp.transpose(x, (1, 0, 3, 4, 2)).reshape(S, P, Cin).astype(jnp.float32)
    enc_wt = jnp.transpose(enc_w)
    dec_wt = jnp.transpose(params["dec_w"])
    out_wt = jnp.transpose(params["out_w"])

    def bn(h, p):
        return (h - p["mean"]) * (p["gamma"] / jnp.sqrt(p["var"] + 1e-5)) + p["beta"]

    h = jnp.zeros((P, Hc), jnp.float32)
    for t in range(S):
        comb = jnp.concatenate([x_flat[t], h], axis=1)
        gates = jnp.dot(comb, enc_wt, precision=hi) + params["enc_b"]
        z = jax.nn.sigmoid(gates[:, :Hc])
        n = jnp.tanh(gates[:, 2 * Hc:])
        h = (1.0 - z) * h + z * n
        h = bn(h, params["enc_bn"])
    enc_last = h
    comb = jnp.concatenate([h, h], axis=1)
    g = jnp.dot(comb, dec_wt, precision=hi) + params["dec_b"]
    z = jax.nn.sigmoid(g[:, :Hc])
    n = jnp.tanh(g[:, 2 * Hc:])
    hd = (1.0 - z) * h + z * n
    hd = bn(hd, params["dec_bn"]) + enc_last
    o = jnp.dot(hd, out_wt, precision=hi) + params["out_b"]
    out = o.reshape(B, H, W, -1)
    return jnp.transpose(out, (0, 3, 1, 2))[:, None]


def init_params(key, Cin, hidden_channels, Cout):
    Hc = hidden_channels // 2
    ks = jax.random.split(key, 8)

    def w(k, shape, s=0.1):
        return s * jax.random.normal(k, shape, jnp.float32)

    def bn(k, c):
        k1, k2, k3, k4 = jax.random.split(k, 4)
        return dict(gamma=1.0 + 0.1 * jax.random.normal(k1, (c,), jnp.float32),
                    beta=0.1 * jax.random.normal(k2, (c,), jnp.float32),
                    mean=0.05 * jax.random.normal(k3, (c,), jnp.float32),
                    var=jax.random.uniform(k4, (c,), jnp.float32, 0.5, 1.5))

    return dict(
        enc_w=w(ks[0], (3 * Hc, Cin + Hc)),   # ConvGRUCell(Cin, Hc, 1) conv weight
        enc_b=w(ks[1], (3 * Hc,)),
        enc_bn=bn(ks[2], Hc),                 # encoder BatchNorm2d(Hc)
        dec_w=w(ks[3], (3 * Hc, 2 * Hc)),     # ConvGRUCell(Hc, Hc, 1) conv weight
        dec_b=w(ks[4], (3 * Hc,)),
        dec_bn=bn(ks[5], Hc),                 # decoder BatchNorm2d(Hc)
        out_w=w(ks[6], (Cout, Hc)),           # final Conv2d(Hc, Cout, 1)
        out_b=w(ks[7], (Cout,)),
    )


if __name__ == "__main__":
    # Small shapes consistent with the module: (B, S, Cin, H, W), Hc = 64.
    B, S, Cin, H, W = 2, 5, 1, 16, 16
    hidden_channels, Cout = 128, 1

    key = jax.random.PRNGKey(0)
    pkey, xkey = jax.random.split(key)
    params = init_params(pkey, Cin, hidden_channels, Cout)
    x = jax.random.uniform(xkey, (B, S, Cin, H, W), jnp.float32)   # ~ torch.rand

    out = jax.block_until_ready(seq2seq_autoencoder(x, params))
    assert out.shape == (B, 1, Cout, H, W), out.shape

    ref = jax.block_until_ready(reference_forward(x, params))
    np.testing.assert_allclose(np.asarray(out), np.asarray(ref),
                               rtol=1e-3, atol=1e-3)
    print("KERNEL_OK")
</pallas_src>

<mosaic_0001>
module attributes {stable_mosaic.version = 11 : i64} {
  func.func @_seq2seq_kernel(%arg0: i32, %arg1: i32, %arg2: memref<1x5x256xf32, #tpu.memory_space<vmem>>, %arg3: memref<128x64xf32, #tpu.memory_space<vmem>>, %arg4: memref<128x64xf32, #tpu.memory_space<vmem>>, %arg5: memref<128x6xf32, #tpu.memory_space<vmem>>, %arg6: memref<1x1x256xf32, #tpu.memory_space<vmem>>) attributes {dimension_semantics = [#tpu.dimension_semantics<parallel>, #tpu.dimension_semantics<parallel>], iteration_bounds = array<i64: 2, 1>, scalar_prefetch = 0 : i64, scratch_operands = 0 : i64, tpu.core_type = #tpu.core_type<tc>, window_params = [{transform_indices = @transform_0, window_bounds = array<i64: 1, 5, 256>}, {pipeline_mode = #tpu.pipeline_mode<synchronous>, transform_indices = @transform_1, window_bounds = array<i64: 128, 64>}, {pipeline_mode = #tpu.pipeline_mode<synchronous>, transform_indices = @transform_2, window_bounds = array<i64: 128, 64>}, {pipeline_mode = #tpu.pipeline_mode<synchronous>, transform_indices = @transform_3, window_bounds = array<i64: 128, 6>}, {transform_indices = @transform_4, window_bounds = array<i64: 1, 1, 256>}]} {
    %c0 = arith.constant 0 : index
    %c0_0 = arith.constant 0 : index
    %0 = vector.load %arg5[%c0, %c0_0] : memref<128x6xf32, #tpu.memory_space<vmem>>, vector<128x6xf32>
    %1 = vector.extract_strided_slice %0 {offsets = [0, 0], sizes = [128, 1], strides = [1, 1]} : vector<128x6xf32> to vector<128x1xf32>
    %2 = vector.extract_strided_slice %0 {offsets = [0, 1], sizes = [64, 1], strides = [1, 1]} : vector<128x6xf32> to vector<64x1xf32>
    %3 = vector.extract_strided_slice %0 {offsets = [64, 1], sizes = [64, 1], strides = [1, 1]} : vector<128x6xf32> to vector<64x1xf32>
    %4 = vector.extract_strided_slice %0 {offsets = [0, 2], sizes = [128, 1], strides = [1, 1]} : vector<128x6xf32> to vector<128x1xf32>
    %5 = vector.extract_strided_slice %0 {offsets = [0, 3], sizes = [64, 1], strides = [1, 1]} : vector<128x6xf32> to vector<64x1xf32>
    %6 = vector.extract_strided_slice %0 {offsets = [64, 3], sizes = [64, 1], strides = [1, 1]} : vector<128x6xf32> to vector<64x1xf32>
    %7 = vector.shape_cast %1 : vector<128x1xf32> to vector<128x1xf32>
    %8 = vector.broadcast %7 : vector<128x1xf32> to vector<128x256xf32>
    %9 = vector.shape_cast %2 : vector<64x1xf32> to vector<64x1xf32>
    %10 = vector.broadcast %9 : vector<64x1xf32> to vector<64x256xf32>
    %11 = vector.shape_cast %3 : vector<64x1xf32> to vector<64x1xf32>
    %12 = vector.broadcast %11 : vector<64x1xf32> to vector<64x256xf32>
    %c0_1 = arith.constant 0 : index
    %c0_2 = arith.constant 0 : index
    %13 = vector.load %arg3[%c0_1, %c0_2] : memref<128x64xf32, #tpu.memory_space<vmem>>, vector<128x64xf32>
    %14 = vector.extract_strided_slice %0 {offsets = [0, 4], sizes = [128, 1], strides = [1, 1]} : vector<128x6xf32> to vector<128x1xf32>
    %15 = vector.shape_cast %14 : vector<128x1xf32> to vector<128x1xf32>
    %16 = vector.broadcast %15 : vector<128x1xf32> to vector<128x256xf32>
    %c0_3 = arith.constant 0 : index
    %c0_4 = arith.constant 0 : index
    %c0_5 = arith.constant 0 : index
    %17 = vector.load %arg2[%c0_3, %c0_4, %c0_5] : memref<1x5x256xf32, #tpu.memory_space<vmem>>, vector<1x1x256xf32>
    %18 = vector.shape_cast %17 : vector<1x1x256xf32> to vector<1x256xf32>
    %19 = vector.broadcast %18 : vector<1x256xf32> to vector<128x256xf32>
    %20 = arith.mulf %16, %19 : vector<128x256xf32>
    %21 = arith.addf %20, %8 : vector<128x256xf32>
    %22 = math.tanh %21 : vector<128x256xf32>
    %23 = vector.extract_strided_slice %22 {offsets = [0, 0], sizes = [64, 256], strides = [1, 1]} : vector<128x256xf32> to vector<64x256xf32>
    %cst = arith.constant 5.000000e-01 : f32
    %24 = vector.broadcast %cst : f32 to vector<64x256xf32>
    %25 = arith.mulf %24, %23 : vector<64x256xf32>
    %cst_6 = arith.constant 5.000000e-01 : f32
    %26 = vector.broadcast %cst_6 : f32 to vector<64x256xf32>
    %27 = arith.addf %25, %26 : vector<64x256xf32>
    %28 = vector.extract_strided_slice %22 {offsets = [64, 0], sizes = [64, 256], strides = [1, 1]} : vector<128x256xf32> to vector<64x256xf32>
    %29 = arith.mulf %27, %28 : vector<64x256xf32>
    %30 = arith.mulf %29, %10 : vector<64x256xf32>
    %31 = arith.addf %30, %12 : vector<64x256xf32>
    %c0_7 = arith.constant 0 : index
    %c1 = arith.constant 1 : index
    %c0_8 = arith.constant 0 : index
    %32 = vector.load %arg2[%c0_7, %c1, %c0_8] : memref<1x5x256xf32, #tpu.memory_space<vmem>>, vector<1x1x256xf32>
    %33 = vector.shape_cast %32 : vector<1x1x256xf32> to vector<1x256xf32>
    %34 = vector.broadcast %33 : vector<1x256xf32> to vector<128x256xf32>
    %35 = arith.mulf %16, %34 : vector<128x256xf32>
    %cst_9 = arith.constant dense<0.000000e+00> : vector<128x256xf32>
    %36 = tpu.matmul %13, %31, %cst_9 {dimension_numbers = #tpu.dot_dimension_numbers<[1], [0], [0], [1], [0, 0, 1, 1], [], []>} : vector<128x64xf32>, vector<64x256xf32>, vector<128x256xf32> -> vector<128x256xf32>
    %37 = arith.addf %35, %36 : vector<128x256xf32>
    %38 = arith.addf %37, %8 : vector<128x256xf32>
    %39 = math.tanh %38 : vector<128x256xf32>
    %40 = vector.extract_strided_slice %39 {offsets = [0, 0], sizes = [64, 256], strides = [1, 1]} : vector<128x256xf32> to vector<64x256xf32>
    %cst_10 = arith.constant 5.000000e-01 : f32
    %41 = vector.broadcast %cst_10 : f32 to vector<64x256xf32>
    %42 = arith.mulf %41, %40 : vector<64x256xf32>
    %cst_11 = arith.constant 5.000000e-01 : f32
    %43 = vector.broadcast %cst_11 : f32 to vector<64x256xf32>
    %44 = arith.addf %42, %43 : vector<64x256xf32>
    %45 = vector.extract_strided_slice %39 {offsets = [64, 0], sizes = [64, 256], strides = [1, 1]} : vector<128x256xf32> to vector<64x256xf32>
    %46 = arith.subf %45, %31 : vector<64x256xf32>
    %47 = arith.mulf %44, %46 : vector<64x256xf32>
    %48 = arith.addf %31, %47 : vector<64x256xf32>
    %49 = arith.mulf %48, %10 : vector<64x256xf32>
    %50 = arith.addf %49, %12 : vector<64x256xf32>
    %c0_12 = arith.constant 0 : index
    %c2 = arith.constant 2 : index
    %c0_13 = arith.constant 0 : index
    %51 = vector.load %arg2[%c0_12, %c2, %c0_13] : memref<1x5x256xf32, #tpu.memory_space<vmem>>, vector<1x1x256xf32>
    %52 = vector.shape_cast %51 : vector<1x1x256xf32> to vector<1x256xf32>
    %53 = vector.broadcast %52 : vector<1x256xf32> to vector<128x256xf32>
    %54 = arith.mulf %16, %53 : vector<128x256xf32>
    %cst_14 = arith.constant dense<0.000000e+00> : vector<128x256xf32>
    %55 = tpu.matmul %13, %50, %cst_14 {dimension_numbers = #tpu.dot_dimension_numbers<[1], [0], [0], [1], [0, 0, 1, 1], [], []>} : vector<128x64xf32>, vector<64x256xf32>, vector<128x256xf32> -> vector<128x256xf32>
    %56 = arith.addf %54, %55 : vector<128x256xf32>
    %57 = arith.addf %56, %8 : vector<128x256xf32>
    %58 = math.tanh %57 : vector<128x256xf32>
    %59 = vector.extract_strided_slice %58 {offsets = [0, 0], sizes = [64, 256], strides = [1, 1]} : vector<128x256xf32> to vector<64x256xf32>
    %cst_15 = arith.constant 5.000000e-01 : f32
    %60 = vector.broadcast %cst_15 : f32 to vector<64x256xf32>
    %61 = arith.mulf %60, %59 : vector<64x256xf32>
    %cst_16 = arith.constant 5.000000e-01 : f32
    %62 = vector.broadcast %cst_16 : f32 to vector<64x256xf32>
    %63 = arith.addf %61, %62 : vector<64x256xf32>
    %64 = vector.extract_strided_slice %58 {offsets = [64, 0], sizes = [64, 256], strides = [1, 1]} : vector<128x256xf32> to vector<64x256xf32>
    %65 = arith.subf %64, %50 : vector<64x256xf32>
    %66 = arith.mulf %63, %65 : vector<64x256xf32>
    %67 = arith.addf %50, %66 : vector<64x256xf32>
    %68 = arith.mulf %67, %10 : vector<64x256xf32>
    %69 = arith.addf %68, %12 : vector<64x256xf32>
    %c0_17 = arith.constant 0 : index
    %c3 = arith.constant 3 : index
    %c0_18 = arith.constant 0 : index
    %70 = vector.load %arg2[%c0_17, %c3, %c0_18] : memref<1x5x256xf32, #tpu.memory_space<vmem>>, vector<1x1x256xf32>
    %71 = vector.shape_cast %70 : vector<1x1x256xf32> to vector<1x256xf32>
    %72 = vector.broadcast %71 : vector<1x256xf32> to vector<128x256xf32>
    %73 = arith.mulf %16, %72 : vector<128x256xf32>
    %cst_19 = arith.constant dense<0.000000e+00> : vector<128x256xf32>
    %74 = tpu.matmul %13, %69, %cst_19 {dimension_numbers = #tpu.dot_dimension_numbers<[1], [0], [0], [1], [0, 0, 1, 1], [], []>} : vector<128x64xf32>, vector<64x256xf32>, vector<128x256xf32> -> vector<128x256xf32>
    %75 = arith.addf %73, %74 : vector<128x256xf32>
    %76 = arith.addf %75, %8 : vector<128x256xf32>
    %77 = math.tanh %76 : vector<128x256xf32>
    %78 = vector.extract_strided_slice %77 {offsets = [0, 0], sizes = [64, 256], strides = [1, 1]} : vector<128x256xf32> to vector<64x256xf32>
    %cst_20 = arith.constant 5.000000e-01 : f32
    %79 = vector.broadcast %cst_20 : f32 to vector<64x256xf32>
    %80 = arith.mulf %79, %78 : vector<64x256xf32>
    %cst_21 = arith.constant 5.000000e-01 : f32
    %81 = vector.broadcast %cst_21 : f32 to vector<64x256xf32>
    %82 = arith.addf %80, %81 : vector<64x256xf32>
    %83 = vector.extract_strided_slice %77 {offsets = [64, 0], sizes = [64, 256], strides = [1, 1]} : vector<128x256xf32> to vector<64x256xf32>
    %84 = arith.subf %83, %69 : vector<64x256xf32>
    %85 = arith.mulf %82, %84 : vector<64x256xf32>
    %86 = arith.addf %69, %85 : vector<64x256xf32>
    %87 = arith.mulf %86, %10 : vector<64x256xf32>
    %88 = arith.addf %87, %12 : vector<64x256xf32>
    %c0_22 = arith.constant 0 : index
    %c4 = arith.constant 4 : index
    %c0_23 = arith.constant 0 : index
    %89 = vector.load %arg2[%c0_22, %c4, %c0_23] : memref<1x5x256xf32, #tpu.memory_space<vmem>>, vector<1x1x256xf32>
    %90 = vector.shape_cast %89 : vector<1x1x256xf32> to vector<1x256xf32>
    %91 = vector.broadcast %90 : vector<1x256xf32> to vector<128x256xf32>
    %92 = arith.mulf %16, %91 : vector<128x256xf32>
    %cst_24 = arith.constant dense<0.000000e+00> : vector<128x256xf32>
    %93 = tpu.matmul %13, %88, %cst_24 {dimension_numbers = #tpu.dot_dimension_numbers<[1], [0], [0], [1], [0, 0, 1, 1], [], []>} : vector<128x64xf32>, vector<64x256xf32>, vector<128x256xf32> -> vector<128x256xf32>
    %94 = arith.addf %92, %93 : vector<128x256xf32>
    %95 = arith.addf %94, %8 : vector<128x256xf32>
    %96 = math.tanh %95 : vector<128x256xf32>
    %97 = vector.extract_strided_slice %96 {offsets = [0, 0], sizes = [64, 256], strides = [1, 1]} : vector<128x256xf32> to vector<64x256xf32>
    %cst_25 = arith.constant 5.000000e-01 : f32
    %98 = vector.broadcast %cst_25 : f32 to vector<64x256xf32>
    %99 = arith.mulf %98, %97 : vector<64x256xf32>
    %cst_26 = arith.constant 5.000000e-01 : f32
    %100 = vector.broadcast %cst_26 : f32 to vector<64x256xf32>
    %101 = arith.addf %99, %100 : vector<64x256xf32>
    %102 = vector.extract_strided_slice %96 {offsets = [64, 0], sizes = [64, 256], strides = [1, 1]} : vector<128x256xf32> to vector<64x256xf32>
    %103 = arith.subf %102, %88 : vector<64x256xf32>
    %104 = arith.mulf %101, %103 : vector<64x256xf32>
    %105 = arith.addf %88, %104 : vector<64x256xf32>
    %106 = arith.mulf %105, %10 : vector<64x256xf32>
    %107 = arith.addf %106, %12 : vector<64x256xf32>
    %c0_27 = arith.constant 0 : index
    %c0_28 = arith.constant 0 : index
    %108 = vector.load %arg4[%c0_27, %c0_28] : memref<128x64xf32, #tpu.memory_space<vmem>>, vector<128x64xf32>
    %cst_29 = arith.constant dense<0.000000e+00> : vector<128x256xf32>
    %109 = tpu.matmul %108, %107, %cst_29 {dimension_numbers = #tpu.dot_dimension_numbers<[1], [0], [0], [1], [0, 0, 1, 1], [], []>} : vector<128x64xf32>, vector<64x256xf32>, vector<128x256xf32> -> vector<128x256xf32>
    %110 = vector.broadcast %4 : vector<128x1xf32> to vector<128x256xf32>
    %111 = arith.addf %109, %110 : vector<128x256xf32>
    %112 = math.tanh %111 : vector<128x256xf32>
    %113 = vector.extract_strided_slice %112 {offsets = [0, 0], sizes = [64, 256], strides = [1, 1]} : vector<128x256xf32> to vector<64x256xf32>
    %cst_30 = arith.constant 5.000000e-01 : f32
    %114 = vector.broadcast %cst_30 : f32 to vector<64x256xf32>
    %115 = arith.mulf %114, %113 : vector<64x256xf32>
    %cst_31 = arith.constant 5.000000e-01 : f32
    %116 = vector.broadcast %cst_31 : f32 to vector<64x256xf32>
    %117 = arith.addf %115, %116 : vector<64x256xf32>
    %118 = vector.extract_strided_slice %112 {offsets = [64, 0], sizes = [64, 256], strides = [1, 1]} : vector<128x256xf32> to vector<64x256xf32>
    %119 = arith.subf %118, %107 : vector<64x256xf32>
    %120 = arith.mulf %117, %119 : vector<64x256xf32>
    %121 = arith.addf %107, %120 : vector<64x256xf32>
    %122 = vector.broadcast %5 : vector<64x1xf32> to vector<64x256xf32>
    %123 = arith.mulf %121, %122 : vector<64x256xf32>
    %124 = vector.broadcast %6 : vector<64x1xf32> to vector<64x256xf32>
    %125 = arith.addf %123, %124 : vector<64x256xf32>
    %126 = arith.addf %125, %107 : vector<64x256xf32>
    %127 = vector.extract_strided_slice %0 {offsets = [0, 5], sizes = [64, 1], strides = [1, 1]} : vector<128x6xf32> to vector<64x1xf32>
    %128 = vector.extract_strided_slice %0 {offsets = [64, 5], sizes = [1, 1], strides = [1, 1]} : vector<128x6xf32> to vector<1x1xf32>
    %129 = vector.broadcast %127 : vector<64x1xf32> to vector<64x256xf32>
    %130 = arith.mulf %126, %129 : vector<64x256xf32>
    %cst_32 = arith.constant dense<0.000000e+00> : vector<256xf32>
    %131 = vector.multi_reduction <add>, %130, %cst_32 [0] : vector<64x256xf32> to vector<256xf32>
    %132 = vector.shape_cast %131 : vector<256xf32> to vector<1x256xf32>
    %133 = vector.broadcast %128 : vector<1x1xf32> to vector<1x256xf32>
    %134 = arith.addf %132, %133 : vector<1x256xf32>
    %c0_33 = arith.constant 0 : index
    %c0_34 = arith.constant 0 : index
    %c0_35 = arith.constant 0 : index
    %135 = vector.load %arg6[%c0_33, %c0_34, %c0_35] : memref<1x1x256xf32, #tpu.memory_space<vmem>>, vector<1x1x256xf32>
    %136 = vector.shape_cast %135 : vector<1x1x256xf32> to vector<1x256xf32>
    %137 = vector.shape_cast %134 : vector<1x256xf32> to vector<1x1x256xf32>
    tpu.vector_store %arg6[%c0_33, %c0_34, %c0_35], %137 {strides = array<i32>} : memref<1x1x256xf32, #tpu.memory_space<vmem>>, vector<1x1x256xf32>,
    return
  }
  func.func @transform_0(%arg0: i32, %arg1: i32) -> (i32, i32, i32) {
    %c0_i32 = arith.constant 0 : i32
    %c0_i32_0 = arith.constant 0 : i32
    return %arg0, %c0_i32, %arg1 : i32, i32, i32
  }
  func.func @transform_1(%arg0: i32, %arg1: i32) -> (i32, i32) {
    %c0_i32 = arith.constant 0 : i32
    %c0_i32_0 = arith.constant 0 : i32
    %c0_i32_1 = arith.constant 0 : i32
    return %c0_i32, %c0_i32_0 : i32, i32
  }
  func.func @transform_2(%arg0: i32, %arg1: i32) -> (i32, i32) {
    %c0_i32 = arith.constant 0 : i32
    %c0_i32_0 = arith.constant 0 : i32
    %c0_i32_1 = arith.constant 0 : i32
    return %c0_i32, %c0_i32_0 : i32, i32
  }
  func.func @transform_3(%arg0: i32, %arg1: i32) -> (i32, i32) {
    %c0_i32 = arith.constant 0 : i32
    %c0_i32_0 = arith.constant 0 : i32
    %c0_i32_1 = arith.constant 0 : i32
    return %c0_i32, %c0_i32_0 : i32, i32
  }
  func.func @transform_4(%arg0: i32, %arg1: i32) -> (i32, i32, i32) {
    %c0_i32 = arith.constant 0 : i32
    %c0_i32_0 = arith.constant 0 : i32
    return %arg0, %c0_i32, %arg1 : i32, i32, i32
  }
}

</mosaic_0001>

<llo_original>
// kernel: tpu_custom_call.1
$region0: #{tpu_custom_call.1}
  #allocation0 [shape = 'u32[]', space=smem, size = 0x4, offset = 0x4, fixed_abs, tag = 'smem constant byte address 0x4 - core index']
  #allocation1 [shape = 'u32[144,128]{1,0:T(1,128)}', space=vmem, size = 0x12000, scoped, tag = 'internal scratch']
  %s0 = inlined_call_operand.vmem [shape: f32[2,5,256], index: 0, kind: input, shape index: {}]
  %s1 = inlined_call_operand.vmem [shape: f32[128,64], index: 1, kind: input, shape index: {}]
  %s2 = inlined_call_operand.vmem [shape: f32[128,64], index: 2, kind: input, shape index: {}]
  %s3 = inlined_call_operand.vmem [shape: f32[128,6], index: 3, kind: input, shape index: {}]
  %s4 = inlined_call_operand.hbm [shape: f32[2,1,256], index: 4, kind: output, shape index: {}]
  %s5 = sld [smem:[#allocation0]]
  $region49: #{tpu_custom_call.1} parent=0
    _
  %s7 = ssub.s32 1, %s5
  %s8 = scalar_select 0, %s7, %s5
  $region1: #{tpu_custom_call.1} parent=0
    #allocation2 [shape = 'u8[2048]{0}', space=vmem, size = 0x800, scoped, tag = 'output window, operand 0']
    #allocation3 [shape = 's32[2]{0}', space=sflag, size = 0x8, scoped, tag = 'scoped memory for tpu_custom_call.1']
    %9 = vsyncpa [#allocation3], 0
    %s10 = scalar_lea.sflag [#allocation3], 1
    %11 = vsyncpa %s10, 0
    loop: start=0, step=1, limit=4
    $region2: #{tpu_custom_call.1} parent=1 // loop_pre_header
      _
    $region3: #{tpu_custom_call.1} parent=1 // loop_header
      %s13 = sphi 0, %s17
      %p14 = scmp.ge.s32.totalorder %s13, 4
      %s20 = sphi 0, %s32
      %s21 = sphi 0, %s28
      %s22 = sphi 0, %s20
      %s23 = sphi 0, %s21
      %s24 = sphi 0, %s22
      %s25 = sphi 0, %s23
      %s37 = sphi 0, %s39
      %s40 = sphi 0, %s37
      %s41 = sphi 0, %s40
      %s57 = sphi 0, %s41
      %s61 = sphi 0, %s61
      %s63 = sphi 0, %s61
      %s64 = sphi 0, %s63
      %s78 = sphi 0, %s64
      %s82 = sphi 0, %s82
      %s84 = sphi 0, %s82
      %s85 = sphi 0, %s84
      %s99 = sphi 0, %s85
      %s103 = sphi 0, %s103
      %s105 = sphi 0, %s103
      %s106 = sphi 0, %s105
      %s120 = sphi 0, %s106
      %s128 = sphi 0, %s130
      %s131 = sphi 0, %s128
      %s132 = sphi 0, %s131
      %s148 = sphi 0, %s132
    $region4: #{tpu_custom_call.1} parent=1 // loop_header_branch
      %16 = sbr.rel (%p14) target = $region8
    $region5: #{tpu_custom_call.1} parent=1 // loop_body
      %s18 = ssub.s32 %s13, 1
      %s19 = ssub.s32 %s13, 2
      %s26 = sadd.s32 1, %s21
      %p27 = scmp.ge.s32.totalorder %s26, 1
      %s28 = scalar_select %p27, 0, %s26
      %s29 = sadd.s32 1, %s20
      %s30 = scalar_select %p27, %s29, %s20
      %p31 = scmp.ge.s32.totalorder %s30, 2
      %s32 = scalar_select %p31, 0, %s30
      %s33 = ssub.s32 %s20, %s32
      %s34 = ssub.s32 %s21, %s28
      %s35 = sor.u32 %s33, %s34
      %p36 = scmp.eq.s32.totalorder %s35, 0
      %s38 = sadd.s32 %s37, 1
      %s39 = scalar_select %p36, %s37, %s38
      %p42 = pneg %p36
      %p43 = scmp.eq.s32.totalorder %s13, 1
      %p44 = por %p42, %p43
      %p45 = scmp.ne.s32.totalorder %s37, %s40
      %p46 = scmp.eq.s32.totalorder %s13, 0
      %p47 = por %p45, %p46
      %p48 = scmp.ne.s32.totalorder %s37, %s40
      %p49 = scmp.eq.s32.totalorder %s18, 1
      %p50 = por %p48, %p49
      %p51 = scmp.ne.s32.totalorder %s40, %s41
      %p52 = scmp.eq.s32.totalorder %s18, 0
      %p53 = por %p51, %p52
      %p54 = scmp.ne.s32.totalorder %s40, %s41
      %p55 = scmp.eq.s32.totalorder %s19, 1
      %p56 = por %p54, %p55
      %p58 = scmp.ne.s32.totalorder %s41, %s57
      %p59 = scmp.eq.s32.totalorder %s19, 0
      %p60 = por %p58, %p59
      %s62 = sadd.s32 %s61, 1
      %p65 = scmp.eq.s32.totalorder %s13, 1
      %p66 = scmp.ne.s32.totalorder %s61, %s63
      %p67 = scmp.eq.s32.totalorder %s13, 0
      %p68 = por %p66, %p67
      %p69 = scmp.ne.s32.totalorder %s61, %s63
      %p70 = scmp.eq.s32.totalorder %s18, 1
      %p71 = por %p69, %p70
      %p72 = scmp.ne.s32.totalorder %s63, %s64
      %p73 = scmp.eq.s32.totalorder %s18, 0
      %p74 = por %p72, %p73
      %p75 = scmp.ne.s32.totalorder %s63, %s64
      %p76 = scmp.eq.s32.totalorder %s19, 1
      %p77 = por %p75, %p76
      %p79 = scmp.ne.s32.totalorder %s64, %s78
      %p80 = scmp.eq.s32.totalorder %s19, 0
      %p81 = por %p79, %p80
      %s83 = sadd.s32 %s82, 1
      %p86 = scmp.eq.s32.totalorder %s13, 1
      %p87 = scmp.ne.s32.totalorder %s82, %s84
      %p88 = scmp.eq.s32.totalorder %s13, 0
      %p89 = por %p87, %p88
      %p90 = scmp.ne.s32.totalorder %s82, %s84
      %p91 = scmp.eq.s32.totalorder %s18, 1
      %p92 = por %p90, %p91
      %p93 = scmp.ne.s32.totalorder %s84, %s85
      %p94 = scmp.eq.s32.totalorder %s18, 0
      %p95 = por %p93, %p94
      %p96 = scmp.ne.s32.totalorder %s84, %s85
      %p97 = scmp.eq.s32.totalorder %s19, 1
      %p98 = por %p96, %p97
      %p100 = scmp.ne.s32.totalorder %s85, %s99
      %p101 = scmp.eq.s32.totalorder %s19, 0
      %p102 = por %p100, %p101
      %s104 = sadd.s32 %s103, 1
      %p107 = scmp.eq.s32.totalorder %s13, 1
      %p108 = scmp.ne.s32.totalorder %s103, %s105
      %p109 = scmp.eq.s32.totalorder %s13, 0
      %p110 = por %p108, %p109
      %p111 = scmp.ne.s32.totalorder %s103, %s105
      %p112 = scmp.eq.s32.totalorder %s18, 1
      %p113 = por %p111, %p112
      %p114 = scmp.ne.s32.totalorder %s105, %s106
      %p115 = scmp.eq.s32.totalorder %s18, 0
      %p116 = por %p114, %p115
      %p117 = scmp.ne.s32.totalorder %s105, %s106
      %p118 = scmp.eq.s32.totalorder %s19, 1
      %p119 = por %p117, %p118
      %p121 = scmp.ne.s32.totalorder %s106, %s120
      %p122 = scmp.eq.s32.totalorder %s19, 0
      %p123 = por %p121, %p122
      %s124 = ssub.s32 %s20, %s32
      %s125 = ssub.s32 %s21, %s28
      %s126 = sor.u32 %s124, %s125
      %p127 = scmp.eq.s32.totalorder %s126, 0
      %s129 = sadd.s32 %s128, 1
      %s130 = scalar_select %p127, %s128, %s129
      %p133 = pneg %p127
      %p134 = scmp.eq.s32.totalorder %s13, 1
      %p135 = por %p133, %p134
      %p136 = scmp.ne.s32.totalorder %s128, %s131
      %p137 = scmp.eq.s32.totalorder %s13, 0
      %p138 = por %p136, %p137
      %p139 = scmp.ne.s32.totalorder %s128, %s131
      %p140 = scmp.eq.s32.totalorder %s18, 1
      %p141 = por %p139, %p140
      %p142 = scmp.ne.s32.totalorder %s131, %s132
      %p143 = scmp.eq.s32.totalorder %s18, 0
      %p144 = por %p142, %p143
      %p145 = scmp.ne.s32.totalorder %s131, %s132
      %p146 = scmp.eq.s32.totalorder %s19, 1
      %p147 = por %p145, %p146
      %p149 = scmp.ne.s32.totalorder %s132, %s148
      %p150 = scmp.eq.s32.totalorder %s19, 0
      %p151 = por %p149, %p150
      %p152 = scmp.le.s32.totalorder 1, %s13
      %p153 = scmp.lt.s32.totalorder %s13, 3
      %p154 = pnand %p152, %p153
      %p155 = pneg %p154
      // Predicated region
      $region9: #{tpu_custom_call.1} parent=5 // pred_check
        _
      $region10: #{tpu_custom_call.1} parent=5 // pred_check_branch
        %157 = sbr.rel (%p154) target = $region12
      $region11: #{tpu_custom_call.1} parent=5 // pred_region
        %s158 = ssub.s32 %s13, 1
        // Predicated region
        $region13: #{tpu_custom_call.1} parent=11 // pred_check
          %p159 = pneg %p74
        $region14: #{tpu_custom_call.1} parent=11 // pred_check_branch
          %161 = sbr.rel (%p159) target = $region16
        $region15: #{tpu_custom_call.1} parent=11 // pred_region
          _
        $region16: #{tpu_custom_call.1} parent=11 // pred_fallthru
          _
        // Predicated region
        $region17: #{tpu_custom_call.1} parent=11 // pred_check
          %p162 = pneg %p95
        $region18: #{tpu_custom_call.1} parent=11 // pred_check_branch
          %164 = sbr.rel (%p162) target = $region20
        $region19: #{tpu_custom_call.1} parent=11 // pred_region
          _
        $region20: #{tpu_custom_call.1} parent=11 // pred_fallthru
          _
        // Predicated region
        $region21: #{tpu_custom_call.1} parent=11 // pred_check
          %p165 = pneg %p116
        $region22: #{tpu_custom_call.1} parent=11 // pred_check_branch
          %167 = sbr.rel (%p165) target = $region24
        $region23: #{tpu_custom_call.1} parent=11 // pred_region
          _
        $region24: #{tpu_custom_call.1} parent=11 // pred_fallthru
          _
      $region12: #{tpu_custom_call.1} parent=5 // pred_fallthru
        _
      %p168 = scmp.lt.s32.totalorder %s13, 2
      // Predicated region
      $region25: #{tpu_custom_call.1} parent=5 // pred_check
        %p169 = pneg %p168
      $region26: #{tpu_custom_call.1} parent=5 // pred_check_branch
        %171 = sbr.rel (%p169) target = $region28
      $region27: #{tpu_custom_call.1} parent=5 // pred_region
        // Predicated region
        $region29: #{tpu_custom_call.1} parent=27 // pred_check
          %p172 = pneg %p47
        $region30: #{tpu_custom_call.1} parent=27 // pred_check_branch
          %174 = sbr.rel (%p172) target = $region32
        $region31: #{tpu_custom_call.1} parent=27 // pred_region
          %s175 = smul.u32 2, %s21
          %p176 = scmp.lt.s32.totalorder %s20, 1
          %s177 = scalar_select %p176, %s20, 1
          %p178 = scmp.lt.s32.totalorder %s175, 1
          %s179 = scalar_select %p178, %s175, 1
          %s180 = smul.addr %s177, 2
          %s181 = sadd.s32 %s179, %s180
          %s182 = smul.addr %s181, 8
          %s183 = scalar_lea.vmem %s0, %s182
          %s184 = smul.u32 2, %s21
        $region32: #{tpu_custom_call.1} parent=27 // pred_fallthru
          _
      $region28: #{tpu_custom_call.1} parent=5 // pred_fallthru
        _
      %p185 = scmp.le.s32.totalorder 1, %s13
      %p186 = scmp.lt.s32.totalorder %s13, 3
      %p187 = pnand %p185, %p186
      %p188 = pneg %p187
      // Predicated region
      $region33: #{tpu_custom_call.1} parent=5 // pred_check
        _
      $region34: #{tpu_custom_call.1} parent=5 // pred_check_branch
        %190 = sbr.rel (%p187) target = $region36
      $region35: #{tpu_custom_call.1} parent=5 // pred_region
        %s191 = ssub.s32 %s13, 1
        %s192 = smul.u32 2, %s23
        %p193 = scmp.lt.s32.totalorder %s22, 1
        %s194 = scalar_select %p193, %s22, 1
        %p195 = scmp.lt.s32.totalorder %s192, 1
        %s196 = scalar_select %p195, %s192, 1
        %s197 = smul.addr %s194, 2
        %s198 = sadd.s32 %s196, %s197
        %s199 = smul.addr %s198, 8
        %s200 = scalar_lea.vmem %s0, %s199
        %p201 = pneg %p53
        %p202 = pneg %p50
        %p203 = pneg %p74
        %p204 = pneg %p71
        %p205 = pneg %p95
        %p206 = pneg %p92
        %p207 = pneg %p116
        %p208 = pneg %p113
        %p209 = pneg %p144
        %p210 = pneg %p141
        %s211 = sand.u32 %s131, 1
        %s212 = scalar_lea.sflag [#allocation3], %s211
        %s213 = sand.u32 %s131, 1
        %s214 = smul.addr %s213, 2
        %s215 = scalar_lea.vmem [#allocation2], %s214
        %s216 = smul.u32 2, %s23
        %p217 = scmp.lt.s32.totalorder %s22, 1
        %s218 = scalar_select %p217, %s22, 1
        %p219 = scmp.lt.s32.totalorder %s216, 1
        %s220 = scalar_select %p219, %s216, 1
        %s221 = smul.addr %s218, 2
        %s222 = sadd.s32 %s220, %s221
        %s223 = smul.addr %s222, 8
        %s224 = scalar_lea.vmem %s0, %s223
        %s225 = smul.u32 2, %s23
        %s226 = smul.u32 2, %s23
        %v227 = vld [vmem:[%s3] sm:$0xff]
        %v228 = vld [vmem:[%s3 + $0x8] sm:$0xff]
        %v229 = vld [vmem:[%s3 + $0x10] sm:$0xff]
        %v230 = vld [vmem:[%s3 + $0x18] sm:$0xff]
        %v231 = vld [vmem:[%s3 + $0x20] sm:$0xff]
        %v232 = vld [vmem:[%s3 + $0x28] sm:$0xff]
        %v233 = vld [vmem:[%s3 + $0x30] sm:$0xff]
        %v234 = vld [vmem:[%s3 + $0x38] sm:$0xff]
        %v235 = vld [vmem:[%s3 + $0x40] sm:$0xff]
        %v236 = vld [vmem:[%s3 + $0x48] sm:$0xff]
        %v237 = vld [vmem:[%s3 + $0x50] sm:$0xff]
        %v238 = vld [vmem:[%s3 + $0x58] sm:$0xff]
        %v239 = vld [vmem:[%s3 + $0x60] sm:$0xff]
        %v240 = vld [vmem:[%s3 + $0x68] sm:$0xff]
        %v241 = vld [vmem:[%s3 + $0x70] sm:$0xff]
        %v242 = vld [vmem:[%s3 + $0x78] sm:$0xff]
        %244 = vset.pattern.permute.xlu0 0
        %245 = vperm.xlu0 %244, %v227
        %v246 = vpop.permute.xlu0 %245
        %249 = vset.pattern.permute.xlu0 0
        %250 = vperm.xlu0 %249, %v228
        %v251 = vpop.permute.xlu0 %250
        %254 = vset.pattern.permute.xlu0 0
        %255 = vperm.xlu0 %254, %v229
        %v256 = vpop.permute.xlu0 %255
        %259 = vset.pattern.permute.xlu0 0
        %260 = vperm.xlu0 %259, %v230
        %v261 = vpop.permute.xlu0 %260
        %264 = vset.pattern.permute.xlu0 0
        %265 = vperm.xlu0 %264, %v231
        %v266 = vpop.permute.xlu0 %265
        %269 = vset.pattern.permute.xlu0 0
        %270 = vperm.xlu0 %269, %v232
        %v271 = vpop.permute.xlu0 %270
        %274 = vset.pattern.permute.xlu0 0
        %275 = vperm.xlu0 %274, %v233
        %v276 = vpop.permute.xlu0 %275
        %279 = vset.pattern.permute.xlu0 0
        %280 = vperm.xlu0 %279, %v234
        %v281 = vpop.permute.xlu0 %280
        %284 = vset.pattern.permute.xlu0 0
        %285 = vperm.xlu0 %284, %v235
        %v286 = vpop.permute.xlu0 %285
        %289 = vset.pattern.permute.xlu0 0
        %290 = vperm.xlu0 %289, %v236
        %v291 = vpop.permute.xlu0 %290
        %294 = vset.pattern.permute.xlu0 0
        %295 = vperm.xlu0 %294, %v237
        %v296 = vpop.permute.xlu0 %295
        %299 = vset.pattern.permute.xlu0 0
        %300 = vperm.xlu0 %299, %v238
        %v301 = vpop.permute.xlu0 %300
        %304 = vset.pattern.permute.xlu0 0
        %305 = vperm.xlu0 %304, %v239
        %v306 = vpop.permute.xlu0 %305
        %309 = vset.pattern.permute.xlu0 0
        %310 = vperm.xlu0 %309, %v240
        %v311 = vpop.permute.xlu0 %310
        %314 = vset.pattern.permute.xlu0 0
        %315 = vperm.xlu0 %314, %v241
        %v316 = vpop.permute.xlu0 %315
        %319 = vset.pattern.permute.xlu0 0
        %320 = vperm.xlu0 %319, %v242
        %v321 = vpop.permute.xlu0 %320
        %323 = vset.pattern.permute.xlu0 1
        %324 = vperm.xlu0 %323, %v227
        %v325 = vpop.permute.xlu0 %324
        %327 = vset.pattern.permute.xlu0 1
        %328 = vperm.xlu0 %327, %v228
        %v329 = vpop.permute.xlu0 %328
        %331 = vset.pattern.permute.xlu0 1
        %332 = vperm.xlu0 %331, %v229
        %v333 = vpop.permute.xlu0 %332
        %335 = vset.pattern.permute.xlu0 1
        %336 = vperm.xlu0 %335, %v230
        %v337 = vpop.permute.xlu0 %336
        %339 = vset.pattern.permute.xlu0 1
        %340 = vperm.xlu0 %339, %v231
        %v341 = vpop.permute.xlu0 %340
        %343 = vset.pattern.permute.xlu0 1
        %344 = vperm.xlu0 %343, %v232
        %v345 = vpop.permute.xlu0 %344
        %347 = vset.pattern.permute.xlu0 1
        %348 = vperm.xlu0 %347, %v233
        %v349 = vpop.permute.xlu0 %348
        %351 = vset.pattern.permute.xlu0 1
        %352 = vperm.xlu0 %351, %v234
        %v353 = vpop.permute.xlu0 %352
        %355 = vset.pattern.permute.xlu0 1
        %356 = vperm.xlu0 %355, %v235
        %v357 = vpop.permute.xlu0 %356
        %359 = vset.pattern.permute.xlu0 1
        %360 = vperm.xlu0 %359, %v236
        %v361 = vpop.permute.xlu0 %360
        %363 = vset.pattern.permute.xlu0 1
        %364 = vperm.xlu0 %363, %v237
        %v365 = vpop.permute.xlu0 %364
        %367 = vset.pattern.permute.xlu0 1
        %368 = vperm.xlu0 %367, %v238
        %v369 = vpop.permute.xlu0 %368
        %371 = vset.pattern.permute.xlu0 1
        %372 = vperm.xlu0 %371, %v239
        %v373 = vpop.permute.xlu0 %372
        %375 = vset.pattern.permute.xlu0 1
        %376 = vperm.xlu0 %375, %v240
        %v377 = vpop.permute.xlu0 %376
        %379 = vset.pattern.permute.xlu0 1
        %380 = vperm.xlu0 %379, %v241
        %v381 = vpop.permute.xlu0 %380
        %383 = vset.pattern.permute.xlu0 1
        %384 = vperm.xlu0 %383, %v242
        %v385 = vpop.permute.xlu0 %384
        %v387 = vld [vmem:[%s1] sm:$0xff]
        %v388 = vld [vmem:[%s1 + $0x8] sm:$0xff]
        %v389 = vld [vmem:[%s1 + $0x10] sm:$0xff]
        %v390 = vld [vmem:[%s1 + $0x18] sm:$0xff]
        %v391 = vld [vmem:[%s1 + $0x20] sm:$0xff]
        %v392 = vld [vmem:[%s1 + $0x28] sm:$0xff]
        %v393 = vld [vmem:[%s1 + $0x30] sm:$0xff]
        %v394 = vld [vmem:[%s1 + $0x38] sm:$0xff]
        %v395 = vld [vmem:[%s1 + $0x40] sm:$0xff]
        %v396 = vld [vmem:[%s1 + $0x48] sm:$0xff]
        %v397 = vld [vmem:[%s1 + $0x50] sm:$0xff]
        %v398 = vld [vmem:[%s1 + $0x58] sm:$0xff]
        %v399 = vld [vmem:[%s1 + $0x60] sm:$0xff]
        %v400 = vld [vmem:[%s1 + $0x68] sm:$0xff]
        %v401 = vld [vmem:[%s1 + $0x70] sm:$0xff]
        %v402 = vld [vmem:[%s1 + $0x78] sm:$0xff]
        %403 = vset.pattern.permute.xlu0 4
        %404 = vperm.xlu0 %403, %v227
        %v405 = vpop.permute.xlu0 %404
        %407 = vset.pattern.permute.xlu0 4
        %408 = vperm.xlu0 %407, %v228
        %v409 = vpop.permute.xlu0 %408
        %411 = vset.pattern.permute.xlu0 4
        %412 = vperm.xlu0 %411, %v229
        %v413 = vpop.permute.xlu0 %412
        %415 = vset.pattern.permute.xlu0 4
        %416 = vperm.xlu0 %415, %v230
        %v417 = vpop.permute.xlu0 %416
        %419 = vset.pattern.permute.xlu0 4
        %420 = vperm.xlu0 %419, %v231
        %v421 = vpop.permute.xlu0 %420
        %423 = vset.pattern.permute.xlu0 4
        %424 = vperm.xlu0 %423, %v232
        %v425 = vpop.permute.xlu0 %424
        %427 = vset.pattern.permute.xlu0 4
        %428 = vperm.xlu0 %427, %v233
        %v429 = vpop.permute.xlu0 %428
        %431 = vset.pattern.permute.xlu0 4
        %432 = vperm.xlu0 %431, %v234
        %v433 = vpop.permute.xlu0 %432
        %435 = vset.pattern.permute.xlu0 4
        %436 = vperm.xlu0 %435, %v235
        %v437 = vpop.permute.xlu0 %436
        %439 = vset.pattern.permute.xlu0 4
        %440 = vperm.xlu0 %439, %v236
        %v441 = vpop.permute.xlu0 %440
        %443 = vset.pattern.permute.xlu0 4
        %444 = vperm.xlu0 %443, %v237
        %v445 = vpop.permute.xlu0 %444
        %447 = vset.pattern.permute.xlu0 4
        %448 = vperm.xlu0 %447, %v238
        %v449 = vpop.permute.xlu0 %448
        %451 = vset.pattern.permute.xlu0 4
        %452 = vperm.xlu0 %451, %v239
        %v453 = vpop.permute.xlu0 %452
        %455 = vset.pattern.permute.xlu0 4
        %456 = vperm.xlu0 %455, %v240
        %v457 = vpop.permute.xlu0 %456
        %459 = vset.pattern.permute.xlu0 4
        %460 = vperm.xlu0 %459, %v241
        %v461 = vpop.permute.xlu0 %460
        %463 = vset.pattern.permute.xlu0 4
        %464 = vperm.xlu0 %463, %v242
        %v465 = vpop.permute.xlu0 %464
        %v467 = vld [vmem:[%s224] ss:$8 sm:$0x3]
        %v469 = vlaneseq
        %v470 = vshrl.u32 %v469, 7
        %v471 = vsub.s32 0, %v470
        %v472 = vrot.slane %v467, %v471
        %v473 = vlaneseq
        %v474 = vshrl.u32 %v473, 7
        %v475 = vsub.s32 1, %v474
        %v476 = vrot.slane %v467, %v475
        %v479 = vmul.f32 %v405, %v472
        %v480 = vmul.f32 %v405, %v476
        %v481 = vmul.f32 %v409, %v472
        %v482 = vmul.f32 %v409, %v476
        %v483 = vmul.f32 %v413, %v472
        %v484 = vmul.f32 %v413, %v476
        %v485 = vmul.f32 %v417, %v472
        %v486 = vmul.f32 %v417, %v476
        %v487 = vmul.f32 %v421, %v472
        %v488 = vmul.f32 %v421, %v476
        %v489 = vmul.f32 %v425, %v472
        %v490 = vmul.f32 %v425, %v476
        %v491 = vmul.f32 %v429, %v472
        %v492 = vmul.f32 %v429, %v476
        %v493 = vmul.f32 %v433, %v472
        %v494 = vmul.f32 %v433, %v476
        %v495 = vmul.f32 %v437, %v472
        %v496 = vmul.f32 %v437, %v476
        %v497 = vmul.f32 %v441, %v472
        %v498 = vmul.f32 %v441, %v476
        %v499 = vmul.f32 %v445, %v472
        %v500 = vmul.f32 %v445, %v476
        %v501 = vmul.f32 %v449, %v472
        %v502 = vmul.f32 %v449, %v476
        %v503 = vmul.f32 %v453, %v472
        %v504 = vmul.f32 %v453, %v476
        %v505 = vmul.f32 %v457, %v472
        %v506 = vmul.f32 %v457, %v476
        %v507 = vmul.f32 %v461, %v472
        %v508 = vmul.f32 %v461, %v476
        %v509 = vmul.f32 %v465, %v472
        %v510 = vmul.f32 %v465, %v476
        %v511 = vadd.f32 %v479, %v246
        %v512 = vadd.f32 %v480, %v246
        %v513 = vadd.f32 %v481, %v251
        %v514 = vadd.f32 %v482, %v251
        %v515 = vadd.f32 %v483, %v256
        %v516 = vadd.f32 %v484, %v256
        %v517 = vadd.f32 %v485, %v261
        %v518 = vadd.f32 %v486, %v261
        %v519 = vadd.f32 %v487, %v266
        %v520 = vadd.f32 %v488, %v266
        %v521 = vadd.f32 %v489, %v271
        %v522 = vadd.f32 %v490, %v271
        %v523 = vadd.f32 %v491, %v276
        %v524 = vadd.f32 %v492, %v276
        %v525 = vadd.f32 %v493, %v281
        %v526 = vadd.f32 %v494, %v281
        %v527 = vadd.f32 %v495, %v286
        %v528 = vadd.f32 %v496, %v286
        %v529 = vadd.f32 %v497, %v291
        %v530 = vadd.f32 %v498, %v291
        %v531 = vadd.f32 %v499, %v296
        %v532 = vadd.f32 %v500, %v296
        %v533 = vadd.f32 %v501, %v301
        %v534 = vadd.f32 %v502, %v301
        %v535 = vadd.f32 %v503, %v306
        %v536 = vadd.f32 %v504, %v306
        %v537 = vadd.f32 %v505, %v311
        %v538 = vadd.f32 %v506, %v311
        %v539 = vadd.f32 %v507, %v316
        %v540 = vadd.f32 %v508, %v316
        %v541 = vadd.f32 %v509, %v321
        %v542 = vadd.f32 %v510, %v321
        %v543 = vtanh.pop %v511
        %v544 = vtanh.pop %v512
        %v545 = vtanh.pop %v513
        %v546 = vtanh.pop %v514
        %v547 = vtanh.pop %v515
        %v548 = vtanh.pop %v516
        %v549 = vtanh.pop %v517
        %v550 = vtanh.pop %v518
        %v551 = vtanh.pop %v519
        %v552 = vtanh.pop %v520
        %v553 = vtanh.pop %v521
        %v554 = vtanh.pop %v522
        %v555 = vtanh.pop %v523
        %v556 = vtanh.pop %v524
        %v557 = vtanh.pop %v525
        %v558 = vtanh.pop %v526
        %v559 = vtanh.pop %v527
        %v560 = vtanh.pop %v528
        %v561 = vtanh.pop %v529
        %v562 = vtanh.pop %v530
        %v563 = vtanh.pop %v531
        %v564 = vtanh.pop %v532
        %v565 = vtanh.pop %v533
        %v566 = vtanh.pop %v534
        %v567 = vtanh.pop %v535
        %v568 = vtanh.pop %v536
        %v569 = vtanh.pop %v537
        %v570 = vtanh.pop %v538
        %v571 = vtanh.pop %v539
        %v572 = vtanh.pop %v540
        %v573 = vtanh.pop %v541
        %v574 = vtanh.pop %v542
        %v575 = vmul.f32 %v543, 0.5
        %v576 = vmul.f32 %v544, 0.5
        %v577 = vmul.f32 %v545, 0.5
        %v578 = vmul.f32 %v546, 0.5
        %v579 = vmul.f32 %v547, 0.5
        %v580 = vmul.f32 %v548, 0.5
        %v581 = vmul.f32 %v549, 0.5
        %v582 = vmul.f32 %v550, 0.5
        %v583 = vmul.f32 %v551, 0.5
        %v584 = vmul.f32 %v552, 0.5
        %v585 = vmul.f32 %v553, 0.5
        %v586 = vmul.f32 %v554, 0.5
        %v587 = vmul.f32 %v555, 0.5
        %v588 = vmul.f32 %v556, 0.5
        %v589 = vmul.f32 %v557, 0.5
        %v590 = vmul.f32 %v558, 0.5
        %v591 = vadd.f32 %v575, 0.5
        %v592 = vadd.f32 %v576, 0.5
        %v593 = vadd.f32 %v577, 0.5
        %v594 = vadd.f32 %v578, 0.5
        %v595 = vadd.f32 %v579, 0.5
        %v596 = vadd.f32 %v580, 0.5
        %v597 = vadd.f32 %v581, 0.5
        %v598 = vadd.f32 %v582, 0.5
        %v599 = vadd.f32 %v583, 0.5
        %v600 = vadd.f32 %v584, 0.5
        %v601 = vadd.f32 %v585, 0.5
        %v602 = vadd.f32 %v586, 0.5
        %v603 = vadd.f32 %v587, 0.5
        %v604 = vadd.f32 %v588, 0.5
        %v605 = vadd.f32 %v589, 0.5
        %v606 = vadd.f32 %v590, 0.5
        %v607 = vmul.f32 %v591, %v559
        %v608 = vmul.f32 %v592, %v560
        %v609 = vmul.f32 %v593, %v561
        %v610 = vmul.f32 %v594, %v562
        %v611 = vmul.f32 %v595, %v563
        %v612 = vmul.f32 %v596, %v564
        %v613 = vmul.f32 %v597, %v565
        %v614 = vmul.f32 %v598, %v566
        %v615 = vmul.f32 %v599, %v567
        %v616 = vmul.f32 %v600, %v568
        %v617 = vmul.f32 %v601, %v569
        %v618 = vmul.f32 %v602, %v570
        %v619 = vmul.f32 %v603, %v571
        %v620 = vmul.f32 %v604, %v572
        %v621 = vmul.f32 %v605, %v573
        %v622 = vmul.f32 %v606, %v574
        %v623 = vmul.f32 %v607, %v325
        %v624 = vmul.f32 %v608, %v325
        %v625 = vmul.f32 %v609, %v329
        %v626 = vmul.f32 %v610, %v329
        %v627 = vmul.f32 %v611, %v333
        %v628 = vmul.f32 %v612, %v333
        %v629 = vmul.f32 %v613, %v337
        %v630 = vmul.f32 %v614, %v337
        %v631 = vmul.f32 %v615, %v341
        %v632 = vmul.f32 %v616, %v341
        %v633 = vmul.f32 %v617, %v345
        %v634 = vmul.f32 %v618, %v345
        %v635 = vmul.f32 %v619, %v349
        %v636 = vmul.f32 %v620, %v349
        %v637 = vmul.f32 %v621, %v353
        %v638 = vmul.f32 %v622, %v353
        %v639 = vadd.f32 %v623, %v357
        %v640 = vadd.f32 %v624, %v357
        %v641 = vadd.f32 %v625, %v361
        %v642 = vadd.f32 %v626, %v361
        %v643 = vadd.f32 %v627, %v365
        %v644 = vadd.f32 %v628, %v365
        %v645 = vadd.f32 %v629, %v369
        %v646 = vadd.f32 %v630, %v369
        %v647 = vadd.f32 %v631, %v373
        %v648 = vadd.f32 %v632, %v373
        %v649 = vadd.f32 %v633, %v377
        %v650 = vadd.f32 %v634, %v377
        %v651 = vadd.f32 %v635, %v381
        %v652 = vadd.f32 %v636, %v381
        %v653 = vadd.f32 %v637, %v385
        %v654 = vadd.f32 %v638, %v385
        %s655 = scalar_lea.vmem %s224, 1
        %v656 = vld [vmem:[%s655] ss:$8 sm:$0x3]
        %v658 = vlaneseq
        %v659 = vshrl.u32 %v658, 7
        %v660 = vsub.s32 0, %v659
        %v661 = vrot.slane %v656, %v660
        %v662 = vlaneseq
        %v663 = vshrl.u32 %v662, 7
        %v664 = vsub.s32 1, %v663
        %v665 = vrot.slane %v656, %v664
        %v668 = vmul.f32 %v405, %v661
        %v669 = vmul.f32 %v405, %v665
        %v670 = vmul.f32 %v409, %v661
        %v671 = vmul.f32 %v409, %v665
        %v672 = vmul.f32 %v413, %v661
        %v673 = vmul.f32 %v413, %v665
        %v674 = vmul.f32 %v417, %v661
        %v675 = vmul.f32 %v417, %v665
        %v676 = vmul.f32 %v421, %v661
        %v677 = vmul.f32 %v421, %v665
        %v678 = vmul.f32 %v425, %v661
        %v679 = vmul.f32 %v425, %v665
        %v680 = vmul.f32 %v429, %v661
        %v681 = vmul.f32 %v429, %v665
        %v682 = vmul.f32 %v433, %v661
        %v683 = vmul.f32 %v433, %v665
        %v684 = vmul.f32 %v437, %v661
        %v685 = vmul.f32 %v437, %v665
        %v686 = vmul.f32 %v441, %v661
        %v687 = vmul.f32 %v441, %v665
        %v688 = vmul.f32 %v445, %v661
        %v689 = vmul.f32 %v445, %v665
        %v690 = vmul.f32 %v449, %v661
        %v691 = vmul.f32 %v449, %v665
        %v692 = vmul.f32 %v453, %v661
        %v693 = vmul.f32 %v453, %v665
        %v694 = vmul.f32 %v457, %v661
        %v695 = vmul.f32 %v457, %v665
        %v696 = vmul.f32 %v461, %v661
        %v697 = vmul.f32 %v461, %v665
        %v698 = vmul.f32 %v465, %v661
        %v699 = vmul.f32 %v465, %v665
        %vm700 = vcmask 523264
        %v702 = vsel %vm700, %v387, 0
        %v705 = vsel %vm700, %v388, 0
        %v708 = vsel %vm700, %v389, 0
        %v711 = vsel %vm700, %v390, 0
        %v714 = vsel %vm700, %v391, 0
        %v717 = vsel %vm700, %v392, 0
        %v720 = vsel %vm700, %v393, 0
        %v723 = vsel %vm700, %v394, 0
        %v726 = vsel %vm700, %v395, 0
        %v729 = vsel %vm700, %v396, 0
        %v732 = vsel %vm700, %v397, 0
        %v735 = vsel %vm700, %v398, 0
        %v738 = vsel %vm700, %v399, 0
        %v741 = vsel %vm700, %v400, 0
        %v744 = vsel %vm700, %v401, 0
        %v747 = vsel %vm700, %v402, 0
        %749 = vmatprep.subr.mxu0 0.0
        %750 = vmatpush1.msra.mxu0 0.0
        %751 = vmatprep.subr.mxu0 0.0
        %752 = vmatpush1.msra.mxu0 0.0
        %753 = vmatprep.subr.mxu0 0.0
        %754 = vmatpush1.msra.mxu0 0.0
        %755 = vmatprep.subr.mxu0 0.0
        %756 = vmatpush1.msra.mxu0 0.0
        %757 = vmatprep.subr.mxu0 0.0
        %758 = vmatpush1.msra.mxu0 0.0
        %759 = vmatprep.subr.mxu0 0.0
        %760 = vmatpush1.msra.mxu0 0.0
        %761 = vmatprep.subr.mxu0 0.0
        %762 = vmatpush1.msra.mxu0 0.0
        %763 = vmatprep.subr.mxu0 0.0
        %764 = vmatpush1.msra.mxu0 0.0
        %765 = vmatprep.subr.mxu0 %v654
        %766 = vmatpush1.msra.mxu0 %v653
        %767 = vmatprep.subr.mxu0 %v652
        %768 = vmatpush1.msra.mxu0 %v651
        %769 = vmatprep.subr.mxu0 %v650
        %770 = vmatpush1.msra.mxu0 %v649
        %771 = vmatprep.subr.mxu0 %v648
        %772 = vmatpush1.msra.mxu0 %v647
        %773 = vmatprep.subr.mxu0 %v646
        %774 = vmatpush1.msra.mxu0 %v645
        %775 = vmatprep.subr.mxu0 %v644
        %776 = vmatpush1.msra.mxu0 %v643
        %777 = vmatprep.subr.mxu0 %v642
        %778 = vmatpush1.msra.mxu0 %v641
        %779 = vmatprep.subr.mxu0 %v640
        %780 = vmatpush1.msra.mxu0 %v639
        %781 = vmatprep.subr.mxu0 0.0
        %782 = vmatpush2.msra.mxu0 0.0
        %783 = vmatprep.subr.mxu0 0.0
        %784 = vmatpush2.msra.mxu0 0.0
        %785 = vmatprep.subr.mxu0 0.0
        %786 = vmatpush2.msra.mxu0 0.0
        %787 = vmatprep.subr.mxu0 0.0
        %788 = vmatpush2.msra.mxu0 0.0
        %789 = vmatprep.subr.mxu0 0.0
        %790 = vmatpush2.msra.mxu0 0.0
        %791 = vmatprep.subr.mxu0 0.0
        %792 = vmatpush2.msra.mxu0 0.0
        %793 = vmatprep.subr.mxu0 0.0
        %794 = vmatpush2.msra.mxu0 0.0
        %795 = vmatprep.subr.mxu0 0.0
        %796 = vmatpush2.msra.mxu0 0.0
        %797 = vmatprep.subr.mxu0 0.0
        %798 = vmatpush2.msra.mxu0 0.0
        %799 = vmatprep.subr.mxu0 0.0
        %800 = vmatpush2.msra.mxu0 0.0
        %801 = vmatprep.subr.mxu0 0.0
        %802 = vmatpush2.msra.mxu0 0.0
        %803 = vmatprep.subr.mxu0 0.0
        %804 = vmatpush2.msra.mxu0 0.0
        %805 = vmatprep.subr.mxu0 0.0
        %806 = vmatpush2.msra.mxu0 0.0
        %807 = vmatprep.subr.mxu0 0.0
        %808 = vmatpush2.msra.mxu0 0.0
        %809 = vmatprep.subr.mxu0 0.0
        %810 = vmatpush2.msra.mxu0 0.0
        %811 = vmatprep.subr.mxu0 0.0
        %812 = vmatpush2.msra.mxu0 0.0
        %813 = vmatprep.mubr.f32.mxu0 0.0
        %814 = vmatmul.mubr.f32.gmra.mxu0 %v702
        %v815 = vpop.f32.mrf.mxu0
        %v816 = vadd.f32 0.0, %v815
        %v817 = vpop.f32.mrf.mxu0
        %v818 = vadd.f32 0.0, %v817
        %819 = vmatprep.mubr.f32.mxu0 0.0
        %820 = vmatmul.mubr.f32.gmra.mxu0 %v705
        %v821 = vpop.f32.mrf.mxu0
        %v822 = vadd.f32 0.0, %v821
        %v823 = vpop.f32.mrf.mxu0
        %v824 = vadd.f32 0.0, %v823
        %825 = vmatprep.mubr.f32.mxu0 0.0
        %826 = vmatmul.mubr.f32.gmra.mxu0 %v708
        %v827 = vpop.f32.mrf.mxu0
        %v828 = vadd.f32 0.0, %v827
        %v829 = vpop.f32.mrf.mxu0
        %v830 = vadd.f32 0.0, %v829
        %831 = vmatprep.mubr.f32.mxu0 0.0
        %832 = vmatmul.mubr.f32.gmra.mxu0 %v711
        %v833 = vpop.f32.mrf.mxu0
        %v834 = vadd.f32 0.0, %v833
        %v835 = vpop.f32.mrf.mxu0
        %v836 = vadd.f32 0.0, %v835
        %837 = vmatprep.mubr.f32.mxu0 0.0
        %838 = vmatmul.mubr.f32.gmra.mxu0 %v714
        %v839 = vpop.f32.mrf.mxu0
        %v840 = vadd.f32 0.0, %v839
        %v841 = vpop.f32.mrf.mxu0
        %v842 = vadd.f32 0.0, %v841
        %843 = vmatprep.mubr.f32.mxu0 0.0
        %844 = vmatmul.mubr.f32.gmra.mxu0 %v717
        %v845 = vpop.f32.mrf.mxu0
        %v846 = vadd.f32 0.0, %v845
        %v847 = vpop.f32.mrf.mxu0
        %v848 = vadd.f32 0.0, %v847
        %849 = vmatprep.mubr.f32.mxu0 0.0
        %850 = vmatmul.mubr.f32.gmra.mxu0 %v720
        %v851 = vpop.f32.mrf.mxu0
        %v852 = vadd.f32 0.0, %v851
        %v853 = vpop.f32.mrf.mxu0
        %v854 = vadd.f32 0.0, %v853
        %855 = vmatprep.mubr.f32.mxu0 0.0
        %856 = vmatmul.mubr.f32.gmra.mxu0 %v723
        %v857 = vpop.f32.mrf.mxu0
        %v858 = vadd.f32 0.0, %v857
        %v859 = vpop.f32.mrf.mxu0
        %v860 = vadd.f32 0.0, %v859
        %861 = vmatprep.mubr.f32.mxu0 0.0
        %862 = vmatmul.mubr.f32.gmra.mxu0 %v726
        %v863 = vpop.f32.mrf.mxu0
        %v864 = vadd.f32 0.0, %v863
        %v865 = vpop.f32.mrf.mxu0
        %v866 = vadd.f32 0.0, %v865
        %867 = vmatprep.mubr.f32.mxu0 0.0
        %868 = vmatmul.mubr.f32.gmra.mxu0 %v729
        %v869 = vpop.f32.mrf.mxu0
        %v870 = vadd.f32 0.0, %v869
        %v871 = vpop.f32.mrf.mxu0
        %v872 = vadd.f32 0.0, %v871
        %873 = vmatprep.mubr.f32.mxu0 0.0
        %874 = vmatmul.mubr.f32.gmra.mxu0 %v732
        %v875 = vpop.f32.mrf.mxu0
        %v876 = vadd.f32 0.0, %v875
        %v877 = vpop.f32.mrf.mxu0
        %v878 = vadd.f32 0.0, %v877
        %879 = vmatprep.mubr.f32.mxu0 0.0
        %880 = vmatmul.mubr.f32.gmra.mxu0 %v735
        %v881 = vpop.f32.mrf.mxu0
        %v882 = vadd.f32 0.0, %v881
        %v883 = vpop.f32.mrf.mxu0
        %v884 = vadd.f32 0.0, %v883
        %885 = vmatprep.mubr.f32.mxu0 0.0
        %886 = vmatmul.mubr.f32.gmra.mxu0 %v738
        %v887 = vpop.f32.mrf.mxu0
        %v888 = vadd.f32 0.0, %v887
        %v889 = vpop.f32.mrf.mxu0
        %v890 = vadd.f32 0.0, %v889
        %891 = vmatprep.mubr.f32.mxu0 0.0
        %892 = vmatmul.mubr.f32.gmra.mxu0 %v741
        %v893 = vpop.f32.mrf.mxu0
        %v894 = vadd.f32 0.0, %v893
        %v895 = vpop.f32.mrf.mxu0
        %v896 = vadd.f32 0.0, %v895
        %897 = vmatprep.mubr.f32.mxu0 0.0
        %898 = vmatmul.mubr.f32.gmra.mxu0 %v744
        %v899 = vpop.f32.mrf.mxu0
        %v900 = vadd.f32 0.0, %v899
        %v901 = vpop.f32.mrf.mxu0
        %v902 = vadd.f32 0.0, %v901
        %903 = vmatprep.mubr.f32.mxu0 0.0
        %904 = vmatmul.mubr.f32.gmra.mxu0 %v747
        %v905 = vpop.f32.mrf.mxu0
        %v906 = vadd.f32 0.0, %v905
        %v907 = vpop.f32.mrf.mxu0
        %v908 = vadd.f32 0.0, %v907
        %909 = vdwg.mxu0
        %v910 = vadd.f32 %v668, %v816
        %v911 = vadd.f32 %v669, %v818
        %v912 = vadd.f32 %v670, %v822
        %v913 = vadd.f32 %v671, %v824
        %v914 = vadd.f32 %v672, %v828
        %v915 = vadd.f32 %v673, %v830
        %v916 = vadd.f32 %v674, %v834
        %v917 = vadd.f32 %v675, %v836
        %v918 = vadd.f32 %v676, %v840
        %v919 = vadd.f32 %v677, %v842
        %v920 = vadd.f32 %v678, %v846
        %v921 = vadd.f32 %v679, %v848
        %v922 = vadd.f32 %v680, %v852
        %v923 = vadd.f32 %v681, %v854
        %v924 = vadd.f32 %v682, %v858
        %v925 = vadd.f32 %v683, %v860
        %v926 = vadd.f32 %v684, %v864
        %v927 = vadd.f32 %v685, %v866
        %v928 = vadd.f32 %v686, %v870
        %v929 = vadd.f32 %v687, %v872
        %v930 = vadd.f32 %v688, %v876
        %v931 = vadd.f32 %v689, %v878
        %v932 = vadd.f32 %v690, %v882
        %v933 = vadd.f32 %v691, %v884
        %v934 = vadd.f32 %v692, %v888
        %v935 = vadd.f32 %v693, %v890
        %v936 = vadd.f32 %v694, %v894
        %v937 = vadd.f32 %v695, %v896
        %v938 = vadd.f32 %v696, %v900
        %v939 = vadd.f32 %v697, %v902
        %v940 = vadd.f32 %v698, %v906
        %v941 = vadd.f32 %v699, %v908
        %v942 = vadd.f32 %v910, %v246
        %v943 = vadd.f32 %v911, %v246
        %v944 = vadd.f32 %v912, %v251
        %v945 = vadd.f32 %v913, %v251
        %v946 = vadd.f32 %v914, %v256
        %v947 = vadd.f32 %v915, %v256
        %v948 = vadd.f32 %v916, %v261
        %v949 = vadd.f32 %v917, %v261
        %v950 = vadd.f32 %v918, %v266
        %v951 = vadd.f32 %v919, %v266
        %v952 = vadd.f32 %v920, %v271
        %v953 = vadd.f32 %v921, %v271
        %v954 = vadd.f32 %v922, %v276
        %v955 = vadd.f32 %v923, %v276
        %v956 = vadd.f32 %v924, %v281
        %v957 = vadd.f32 %v925, %v281
        %v958 = vadd.f32 %v926, %v286
        %v959 = vadd.f32 %v927, %v286
        %v960 = vadd.f32 %v928, %v291
        %v961 = vadd.f32 %v929, %v291
        %v962 = vadd.f32 %v930, %v296
        %v963 = vadd.f32 %v931, %v296
        %v964 = vadd.f32 %v932, %v301
        %v965 = vadd.f32 %v933, %v301
        %v966 = vadd.f32 %v934, %v306
        %v967 = vadd.f32 %v935, %v306
        %v968 = vadd.f32 %v936, %v311
        %v969 = vadd.f32 %v937, %v311
        %v970 = vadd.f32 %v938, %v316
        %v971 = vadd.f32 %v939, %v316
        %v972 = vadd.f32 %v940, %v321
        %v973 = vadd.f32 %v941, %v321
        %v974 = vtanh.pop %v942
        %v975 = vtanh.pop %v943
        %v976 = vtanh.pop %v944
        %v977 = vtanh.pop %v945
        %v978 = vtanh.pop %v946
        %v979 = vtanh.pop %v947
        %v980 = vtanh.pop %v948
        %v981 = vtanh.pop %v949
        %v982 = vtanh.pop %v950
        %v983 = vtanh.pop %v951
        %v984 = vtanh.pop %v952
        %v985 = vtanh.pop %v953
        %v986 = vtanh.pop %v954
        %v987 = vtanh.pop %v955
        %v988 = vtanh.pop %v956
        %v989 = vtanh.pop %v957
        %v990 = vtanh.pop %v958
        %v991 = vtanh.pop %v959
        %v992 = vtanh.pop %v960
        %v993 = vtanh.pop %v961
        %v994 = vtanh.pop %v962
        %v995 = vtanh.pop %v963
        %v996 = vtanh.pop %v964
        %v997 = vtanh.pop %v965
        %v998 = vtanh.pop %v966
        %v999 = vtanh.pop %v967
        %v1000 = vtanh.pop %v968
        %v1001 = vtanh.pop %v969
        %v1002 = vtanh.pop %v970
        %v1003 = vtanh.pop %v971
        %v1004 = vtanh.pop %v972
        %v1005 = vtanh.pop %v973
        %v1006 = vmul.f32 %v974, 0.5
        %v1007 = vmul.f32 %v975, 0.5
        %v1008 = vmul.f32 %v976, 0.5
        %v1009 = vmul.f32 %v977, 0.5
        %v1010 = vmul.f32 %v978, 0.5
        %v1011 = vmul.f32 %v979, 0.5
        %v1012 = vmul.f32 %v980, 0.5
        %v1013 = vmul.f32 %v981, 0.5
        %v1014 = vmul.f32 %v982, 0.5
        %v1015 = vmul.f32 %v983, 0.5
        %v1016 = vmul.f32 %v984, 0.5
        %v1017 = vmul.f32 %v985, 0.5
        %v1018 = vmul.f32 %v986, 0.5
        %v1019 = vmul.f32 %v987, 0.5
        %v1020 = vmul.f32 %v988, 0.5
        %v1021 = vmul.f32 %v989, 0.5
        %v1022 = vadd.f32 %v1006, 0.5
        %v1023 = vadd.f32 %v1007, 0.5
        %v1024 = vadd.f32 %v1008, 0.5
        %v1025 = vadd.f32 %v1009, 0.5
        %v1026 = vadd.f32 %v1010, 0.5
        %v1027 = vadd.f32 %v1011, 0.5
        %v1028 = vadd.f32 %v1012, 0.5
        %v1029 = vadd.f32 %v1013, 0.5
        %v1030 = vadd.f32 %v1014, 0.5
        %v1031 = vadd.f32 %v1015, 0.5
        %v1032 = vadd.f32 %v1016, 0.5
        %v1033 = vadd.f32 %v1017, 0.5
        %v1034 = vadd.f32 %v1018, 0.5
        %v1035 = vadd.f32 %v1019, 0.5
        %v1036 = vadd.f32 %v1020, 0.5
        %v1037 = vadd.f32 %v1021, 0.5
        %v1038 = vsub.f32 %v990, %v639
        %v1039 = vsub.f32 %v991, %v640
        %v1040 = vsub.f32 %v992, %v641
        %v1041 = vsub.f32 %v993, %v642
        %v1042 = vsub.f32 %v994, %v643
        %v1043 = vsub.f32 %v995, %v644
        %v1044 = vsub.f32 %v996, %v645
        %v1045 = vsub.f32 %v997, %v646
        %v1046 = vsub.f32 %v998, %v647
        %v1047 = vsub.f32 %v999, %v648
        %v1048 = vsub.f32 %v1000, %v649
        %v1049 = vsub.f32 %v1001, %v650
        %v1050 = vsub.f32 %v1002, %v651
        %v1051 = vsub.f32 %v1003, %v652
        %v1052 = vsub.f32 %v1004, %v653
        %v1053 = vsub.f32 %v1005, %v654
        %v1054 = vmul.f32 %v1022, %v1038
        %v1055 = vmul.f32 %v1023, %v1039
        %v1056 = vmul.f32 %v1024, %v1040
        %v1057 = vmul.f32 %v1025, %v1041
        %v1058 = vmul.f32 %v1026, %v1042
        %v1059 = vmul.f32 %v1027, %v1043
        %v1060 = vmul.f32 %v1028, %v1044
        %v1061 = vmul.f32 %v1029, %v1045
        %v1062 = vmul.f32 %v1030, %v1046
        %v1063 = vmul.f32 %v1031, %v1047
        %v1064 = vmul.f32 %v1032, %v1048
        %v1065 = vmul.f32 %v1033, %v1049
        %v1066 = vmul.f32 %v1034, %v1050
        %v1067 = vmul.f32 %v1035, %v1051
        %v1068 = vmul.f32 %v1036, %v1052
        %v1069 = vmul.f32 %v1037, %v1053
        %v1070 = vadd.f32 %v639, %v1054
        %v1071 = vadd.f32 %v640, %v1055
        %v1072 = vadd.f32 %v641, %v1056
        %v1073 = vadd.f32 %v642, %v1057
        %v1074 = vadd.f32 %v643, %v1058
        %v1075 = vadd.f32 %v644, %v1059
        %v1076 = vadd.f32 %v645, %v1060
        %v1077 = vadd.f32 %v646, %v1061
        %v1078 = vadd.f32 %v647, %v1062
        %v1079 = vadd.f32 %v648, %v1063
        %v1080 = vadd.f32 %v649, %v1064
        %v1081 = vadd.f32 %v650, %v1065
        %v1082 = vadd.f32 %v651, %v1066
        %v1083 = vadd.f32 %v652, %v1067
        %v1084 = vadd.f32 %v653, %v1068
        %v1085 = vadd.f32 %v654, %v1069
        %v1086 = vmul.f32 %v1070, %v325
        %v1087 = vmul.f32 %v1071, %v325
        %v1088 = vmul.f32 %v1072, %v329
        %v1089 = vmul.f32 %v1073, %v329
        %v1090 = vmul.f32 %v1074, %v333
        %v1091 = vmul.f32 %v1075, %v333
        %v1092 = vmul.f32 %v1076, %v337
        %v1093 = vmul.f32 %v1077, %v337
        %v1094 = vmul.f32 %v1078, %v341
        %v1095 = vmul.f32 %v1079, %v341
        %v1096 = vmul.f32 %v1080, %v345
        %v1097 = vmul.f32 %v1081, %v345
        %v1098 = vmul.f32 %v1082, %v349
        %v1099 = vmul.f32 %v1083, %v349
        %v1100 = vmul.f32 %v1084, %v353
        %v1101 = vmul.f32 %v1085, %v353
        %v1102 = vadd.f32 %v1086, %v357
        %v1103 = vadd.f32 %v1087, %v357
        %v1104 = vadd.f32 %v1088, %v361
        %v1105 = vadd.f32 %v1089, %v361
        %v1106 = vadd.f32 %v1090, %v365
        %v1107 = vadd.f32 %v1091, %v365
        %v1108 = vadd.f32 %v1092, %v369
        %v1109 = vadd.f32 %v1093, %v369
        %v1110 = vadd.f32 %v1094, %v373
        %v1111 = vadd.f32 %v1095, %v373
        %v1112 = vadd.f32 %v1096, %v377
        %v1113 = vadd.f32 %v1097, %v377
        %v1114 = vadd.f32 %v1098, %v381
        %v1115 = vadd.f32 %v1099, %v381
        %v1116 = vadd.f32 %v1100, %v385
        %v1117 = vadd.f32 %v1101, %v385
        %s1118 = scalar_lea.vmem %s224, 2
        %v1119 = vld [vmem:[%s1118] ss:$8 sm:$0x3]
        %v1121 = vlaneseq
        %v1122 = vshrl.u32 %v1121, 7
        %v1123 = vsub.s32 0, %v1122
        %v1124 = vrot.slane %v1119, %v1123
        %v1125 = vlaneseq
        %v1126 = vshrl.u32 %v1125, 7
        %v1127 = vsub.s32 1, %v1126
        %v1128 = vrot.slane %v1119, %v1127
        %v1131 = vmul.f32 %v405, %v1124
        %v1132 = vmul.f32 %v405, %v1128
        %v1133 = vmul.f32 %v409, %v1124
        %v1134 = vmul.f32 %v409, %v1128
        %v1135 = vmul.f32 %v413, %v1124
        %v1136 = vmul.f32 %v413, %v1128
        %v1137 = vmul.f32 %v417, %v1124
        %v1138 = vmul.f32 %v417, %v1128
        %v1139 = vmul.f32 %v421, %v1124
        %v1140 = vmul.f32 %v421, %v1128
        %v1141 = vmul.f32 %v425, %v1124
        %v1142 = vmul.f32 %v425, %v1128
        %v1143 = vmul.f32 %v429, %v1124
        %v1144 = vmul.f32 %v429, %v1128
        %v1145 = vmul.f32 %v433, %v1124
        %v1146 = vmul.f32 %v433, %v1128
        %v1147 = vmul.f32 %v437, %v1124
        %v1148 = vmul.f32 %v437, %v1128
        %v1149 = vmul.f32 %v441, %v1124
        %v1150 = vmul.f32 %v441, %v1128
        %v1151 = vmul.f32 %v445, %v1124
        %v1152 = vmul.f32 %v445, %v1128
        %v1153 = vmul.f32 %v449, %v1124
        %v1154 = vmul.f32 %v449, %v1128
        %v1155 = vmul.f32 %v453, %v1124
        %v1156 = vmul.f32 %v453, %v1128
        %v1157 = vmul.f32 %v457, %v1124
        %v1158 = vmul.f32 %v457, %v1128
        %v1159 = vmul.f32 %v461, %v1124
        %v1160 = vmul.f32 %v461, %v1128
        %v1161 = vmul.f32 %v465, %v1124
        %v1162 = vmul.f32 %v465, %v1128
        %1163 = vmatprep.subr.mxu0 0.0
        %1164 = vmatpush1.msra.mxu0 0.0
        %1165 = vmatprep.subr.mxu0 0.0
        %1166 = vmatpush1.msra.mxu0 0.0
        %1167 = vmatprep.subr.mxu0 0.0
        %1168 = vmatpush1.msra.mxu0 0.0
        %1169 = vmatprep.subr.mxu0 0.0
        %1170 = vmatpush1.msra.mxu0 0.0
        %1171 = vmatprep.subr.mxu0 0.0
        %1172 = vmatpush1.msra.mxu0 0.0
        %1173 = vmatprep.subr.mxu0 0.0
        %1174 = vmatpush1.msra.mxu0 0.0
        %1175 = vmatprep.subr.mxu0 0.0
        %1176 = vmatpush1.msra.mxu0 0.0
        %1177 = vmatprep.subr.mxu0 0.0
        %1178 = vmatpush1.msra.mxu0 0.0
        %1179 = vmatprep.subr.mxu0 %v1117
        %1180 = vmatpush1.msra.mxu0 %v1116
        %1181 = vmatprep.subr.mxu0 %v1115
        %1182 = vmatpush1.msra.mxu0 %v1114
        %1183 = vmatprep.subr.mxu0 %v1113
        %1184 = vmatpush1.msra.mxu0 %v1112
        %1185 = vmatprep.subr.mxu0 %v1111
        %1186 = vmatpush1.msra.mxu0 %v1110
        %1187 = vmatprep.subr.mxu0 %v1109
        %1188 = vmatpush1.msra.mxu0 %v1108
        %1189 = vmatprep.subr.mxu0 %v1107
        %1190 = vmatpush1.msra.mxu0 %v1106
        %1191 = vmatprep.subr.mxu0 %v1105
        %1192 = vmatpush1.msra.mxu0 %v1104
        %1193 = vmatprep.subr.mxu0 %v1103
        %1194 = vmatpush1.msra.mxu0 %v1102
        %1195 = vmatprep.subr.mxu0 0.0
        %1196 = vmatpush2.msra.mxu0 0.0
        %1197 = vmatprep.subr.mxu0 0.0
        %1198 = vmatpush2.msra.mxu0 0.0
        %1199 = vmatprep.subr.mxu0 0.0
        %1200 = vmatpush2.msra.mxu0 0.0
        %1201 = vmatprep.subr.mxu0 0.0
        %1202 = vmatpush2.msra.mxu0 0.0
        %1203 = vmatprep.subr.mxu0 0.0
        %1204 = vmatpush2.msra.mxu0 0.0
        %1205 = vmatprep.subr.mxu0 0.0
        %1206 = vmatpush2.msra.mxu0 0.0
        %1207 = vmatprep.subr.mxu0 0.0
        %1208 = vmatpush2.msra.mxu0 0.0
        %1209 = vmatprep.subr.mxu0 0.0
        %1210 = vmatpush2.msra.mxu0 0.0
        %1211 = vmatprep.subr.mxu0 0.0
        %1212 = vmatpush2.msra.mxu0 0.0
        %1213 = vmatprep.subr.mxu0 0.0
        %1214 = vmatpush2.msra.mxu0 0.0
        %1215 = vmatprep.subr.mxu0 0.0
        %1216 = vmatpush2.msra.mxu0 0.0
        %1217 = vmatprep.subr.mxu0 0.0
        %1218 = vmatpush2.msra.mxu0 0.0
        %1219 = vmatprep.subr.mxu0 0.0
        %1220 = vmatpush2.msra.mxu0 0.0
        %1221 = vmatprep.subr.mxu0 0.0
        %1222 = vmatpush2.msra.mxu0 0.0
        %1223 = vmatprep.subr.mxu0 0.0
        %1224 = vmatpush2.msra.mxu0 0.0
        %1225 = vmatprep.subr.mxu0 0.0
        %1226 = vmatpush2.msra.mxu0 0.0
        %1227 = vmatprep.mubr.f32.mxu0 0.0
        %1228 = vmatmul.mubr.f32.gmra.mxu0 %v702
        %v1229 = vpop.f32.mrf.mxu0
        %v1230 = vadd.f32 0.0, %v1229
        %v1231 = vpop.f32.mrf.mxu0
        %v1232 = vadd.f32 0.0, %v1231
        %1233 = vmatprep.mubr.f32.mxu0 0.0
        %1234 = vmatmul.mubr.f32.gmra.mxu0 %v705
        %v1235 = vpop.f32.mrf.mxu0
        %v1236 = vadd.f32 0.0, %v1235
        %v1237 = vpop.f32.mrf.mxu0
        %v1238 = vadd.f32 0.0, %v1237
        %1239 = vmatprep.mubr.f32.mxu0 0.0
        %1240 = vmatmul.mubr.f32.gmra.mxu0 %v708
        %v1241 = vpop.f32.mrf.mxu0
        %v1242 = vadd.f32 0.0, %v1241
        %v1243 = vpop.f32.mrf.mxu0
        %v1244 = vadd.f32 0.0, %v1243
        %1245 = vmatprep.mubr.f32.mxu0 0.0
        %1246 = vmatmul.mubr.f32.gmra.mxu0 %v711
        %v1247 = vpop.f32.mrf.mxu0
        %v1248 = vadd.f32 0.0, %v1247
        %v1249 = vpop.f32.mrf.mxu0
        %v1250 = vadd.f32 0.0, %v1249
        %1251 = vmatprep.mubr.f32.mxu0 0.0
        %1252 = vmatmul.mubr.f32.gmra.mxu0 %v714
        %v1253 = vpop.f32.mrf.mxu0
        %v1254 = vadd.f32 0.0, %v1253
        %v1255 = vpop.f32.mrf.mxu0
        %v1256 = vadd.f32 0.0, %v1255
        %1257 = vmatprep.mubr.f32.mxu0 0.0
        %1258 = vmatmul.mubr.f32.gmra.mxu0 %v717
        %v1259 = vpop.f32.mrf.mxu0
        %v1260 = vadd.f32 0.0, %v1259
        %v1261 = vpop.f32.mrf.mxu0
        %v1262 = vadd.f32 0.0, %v1261
        %1263 = vmatprep.mubr.f32.mxu0 0.0
        %1264 = vmatmul.mubr.f32.gmra.mxu0 %v720
        %v1265 = vpop.f32.mrf.mxu0
        %v1266 = vadd.f32 0.0, %v1265
        %v1267 = vpop.f32.mrf.mxu0
        %v1268 = vadd.f32 0.0, %v1267
        %1269 = vmatprep.mubr.f32.mxu0 0.0
        %1270 = vmatmul.mubr.f32.gmra.mxu0 %v723
        %v1271 = vpop.f32.mrf.mxu0
        %v1272 = vadd.f32 0.0, %v1271
        %v1273 = vpop.f32.mrf.mxu0
        %v1274 = vadd.f32 0.0, %v1273
        %1275 = vmatprep.mubr.f32.mxu0 0.0
        %1276 = vmatmul.mubr.f32.gmra.mxu0 %v726
        %v1277 = vpop.f32.mrf.mxu0
        %v1278 = vadd.f32 0.0, %v1277
        %v1279 = vpop.f32.mrf.mxu0
        %v1280 = vadd.f32 0.0, %v1279
        %1281 = vmatprep.mubr.f32.mxu0 0.0
        %1282 = vmatmul.mubr.f32.gmra.mxu0 %v729
        %v1283 = vpop.f32.mrf.mxu0
        %v1284 = vadd.f32 0.0, %v1283
        %v1285 = vpop.f32.mrf.mxu0
        %v1286 = vadd.f32 0.0, %v1285
        %1287 = vmatprep.mubr.f32.mxu0 0.0
        %1288 = vmatmul.mubr.f32.gmra.mxu0 %v732
        %v1289 = vpop.f32.mrf.mxu0
        %v1290 = vadd.f32 0.0, %v1289
        %v1291 = vpop.f32.mrf.mxu0
        %v1292 = vadd.f32 0.0, %v1291
        %1293 = vmatprep.mubr.f32.mxu0 0.0
        %1294 = vmatmul.mubr.f32.gmra.mxu0 %v735
        %v1295 = vpop.f32.mrf.mxu0
        %v1296 = vadd.f32 0.0, %v1295
        %v1297 = vpop.f32.mrf.mxu0
        %v1298 = vadd.f32 0.0, %v1297
        %1299 = vmatprep.mubr.f32.mxu0 0.0
        %1300 = vmatmul.mubr.f32.gmra.mxu0 %v738
        %v1301 = vpop.f32.mrf.mxu0
        %v1302 = vadd.f32 0.0, %v1301
        %v1303 = vpop.f32.mrf.mxu0
        %v1304 = vadd.f32 0.0, %v1303
        %1305 = vmatprep.mubr.f32.mxu0 0.0
        %1306 = vmatmul.mubr.f32.gmra.mxu0 %v741
        %v1307 = vpop.f32.mrf.mxu0
        %v1308 = vadd.f32 0.0, %v1307
        %v1309 = vpop.f32.mrf.mxu0
        %v1310 = vadd.f32 0.0, %v1309
        %1311 = vmatprep.mubr.f32.mxu0 0.0
        %1312 = vmatmul.mubr.f32.gmra.mxu0 %v744
        %v1313 = vpop.f32.mrf.mxu0
        %v1314 = vadd.f32 0.0, %v1313
        %v1315 = vpop.f32.mrf.mxu0
        %v1316 = vadd.f32 0.0, %v1315
        %1317 = vmatprep.mubr.f32.mxu0 0.0
        %1318 = vmatmul.mubr.f32.gmra.mxu0 %v747
        %v1319 = vpop.f32.mrf.mxu0
        %v1320 = vadd.f32 0.0, %v1319
        %v1321 = vpop.f32.mrf.mxu0
        %v1322 = vadd.f32 0.0, %v1321
        %1323 = vdwg.mxu0
        %v1324 = vadd.f32 %v1131, %v1230
        %v1325 = vadd.f32 %v1132, %v1232
        %v1326 = vadd.f32 %v1133, %v1236
        %v1327 = vadd.f32 %v1134, %v1238
        %v1328 = vadd.f32 %v1135, %v1242
        %v1329 = vadd.f32 %v1136, %v1244
        %v1330 = vadd.f32 %v1137, %v1248
        %v1331 = vadd.f32 %v1138, %v1250
        %v1332 = vadd.f32 %v1139, %v1254
        %v1333 = vadd.f32 %v1140, %v1256
        %v1334 = vadd.f32 %v1141, %v1260
        %v1335 = vadd.f32 %v1142, %v1262
        %v1336 = vadd.f32 %v1143, %v1266
        %v1337 = vadd.f32 %v1144, %v1268
        %v1338 = vadd.f32 %v1145, %v1272
        %v1339 = vadd.f32 %v1146, %v1274
        %v1340 = vadd.f32 %v1147, %v1278
        %v1341 = vadd.f32 %v1148, %v1280
        %v1342 = vadd.f32 %v1149, %v1284
        %v1343 = vadd.f32 %v1150, %v1286
        %v1344 = vadd.f32 %v1151, %v1290
        %v1345 = vadd.f32 %v1152, %v1292
        %v1346 = vadd.f32 %v1153, %v1296
        %v1347 = vadd.f32 %v1154, %v1298
        %v1348 = vadd.f32 %v1155, %v1302
        %v1349 = vadd.f32 %v1156, %v1304
        %v1350 = vadd.f32 %v1157, %v1308
        %v1351 = vadd.f32 %v1158, %v1310
        %v1352 = vadd.f32 %v1159, %v1314
        %v1353 = vadd.f32 %v1160, %v1316
        %v1354 = vadd.f32 %v1161, %v1320
        %v1355 = vadd.f32 %v1162, %v1322
        %v1356 = vadd.f32 %v1324, %v246
        %v1357 = vadd.f32 %v1325, %v246
        %v1358 = vadd.f32 %v1326, %v251
        %v1359 = vadd.f32 %v1327, %v251
        %v1360 = vadd.f32 %v1328, %v256
        %v1361 = vadd.f32 %v1329, %v256
        %v1362 = vadd.f32 %v1330, %v261
        %v1363 = vadd.f32 %v1331, %v261
        %v1364 = vadd.f32 %v1332, %v266
        %v1365 = vadd.f32 %v1333, %v266
        %v1366 = vadd.f32 %v1334, %v271
        %v1367 = vadd.f32 %v1335, %v271
        %v1368 = vadd.f32 %v1336, %v276
        %v1369 = vadd.f32 %v1337, %v276
        %v1370 = vadd.f32 %v1338, %v281
        %v1371 = vadd.f32 %v1339, %v281
        %v1372 = vadd.f32 %v1340, %v286
        %v1373 = vadd.f32 %v1341, %v286
        %v1374 = vadd.f32 %v1342, %v291
        %v1375 = vadd.f32 %v1343, %v291
        %v1376 = vadd.f32 %v1344, %v296
        %v1377 = vadd.f32 %v1345, %v296
        %v1378 = vadd.f32 %v1346, %v301
        %v1379 = vadd.f32 %v1347, %v301
        %v1380 = vadd.f32 %v1348, %v306
        %v1381 = vadd.f32 %v1349, %v306
        %v1382 = vadd.f32 %v1350, %v311
        %v1383 = vadd.f32 %v1351, %v311
        %v1384 = vadd.f32 %v1352, %v316
        %v1385 = vadd.f32 %v1353, %v316
        %v1386 = vadd.f32 %v1354, %v321
        %v1387 = vadd.f32 %v1355, %v321
        %v1388 = vtanh.pop %v1356
        %v1389 = vtanh.pop %v1357
        %v1390 = vtanh.pop %v1358
        %v1391 = vtanh.pop %v1359
        %v1392 = vtanh.pop %v1360
        %v1393 = vtanh.pop %v1361
        %v1394 = vtanh.pop %v1362
        %v1395 = vtanh.pop %v1363
        %v1396 = vtanh.pop %v1364
        %v1397 = vtanh.pop %v1365
        %v1398 = vtanh.pop %v1366
        %v1399 = vtanh.pop %v1367
        %v1400 = vtanh.pop %v1368
        %v1401 = vtanh.pop %v1369
        %v1402 = vtanh.pop %v1370
        %v1403 = vtanh.pop %v1371
        %v1404 = vtanh.pop %v1372
        %v1405 = vtanh.pop %v1373
        %v1406 = vtanh.pop %v1374
        %v1407 = vtanh.pop %v1375
        %v1408 = vtanh.pop %v1376
        %v1409 = vtanh.pop %v1377
        %v1410 = vtanh.pop %v1378
        %v1411 = vtanh.pop %v1379
        %v1412 = vtanh.pop %v1380
        %v1413 = vtanh.pop %v1381
        %v1414 = vtanh.pop %v1382
        %v1415 = vtanh.pop %v1383
        %v1416 = vtanh.pop %v1384
        %v1417 = vtanh.pop %v1385
        %v1418 = vtanh.pop %v1386
        %v1419 = vtanh.pop %v1387
        %v1420 = vmul.f32 %v1388, 0.5
        %v1421 = vmul.f32 %v1389, 0.5
        %v1422 = vmul.f32 %v1390, 0.5
        %v1423 = vmul.f32 %v1391, 0.5
        %v1424 = vmul.f32 %v1392, 0.5
        %v1425 = vmul.f32 %v1393, 0.5
        %v1426 = vmul.f32 %v1394, 0.5
        %v1427 = vmul.f32 %v1395, 0.5
        %v1428 = vmul.f32 %v1396, 0.5
        %v1429 = vmul.f32 %v1397, 0.5
        %v1430 = vmul.f32 %v1398, 0.5
        %v1431 = vmul.f32 %v1399, 0.5
        %v1432 = vmul.f32 %v1400, 0.5
        %v1433 = vmul.f32 %v1401, 0.5
        %v1434 = vmul.f32 %v1402, 0.5
        %v1435 = vmul.f32 %v1403, 0.5
        %v1436 = vadd.f32 %v1420, 0.5
        %v1437 = vadd.f32 %v1421, 0.5
        %v1438 = vadd.f32 %v1422, 0.5
        %v1439 = vadd.f32 %v1423, 0.5
        %v1440 = vadd.f32 %v1424, 0.5
        %v1441 = vadd.f32 %v1425, 0.5
        %v1442 = vadd.f32 %v1426, 0.5
        %v1443 = vadd.f32 %v1427, 0.5
        %v1444 = vadd.f32 %v1428, 0.5
        %v1445 = vadd.f32 %v1429, 0.5
        %v1446 = vadd.f32 %v1430, 0.5
        %v1447 = vadd.f32 %v1431, 0.5
        %v1448 = vadd.f32 %v1432, 0.5
        %v1449 = vadd.f32 %v1433, 0.5
        %v1450 = vadd.f32 %v1434, 0.5
        %v1451 = vadd.f32 %v1435, 0.5
        %v1452 = vsub.f32 %v1404, %v1102
        %v1453 = vsub.f32 %v1405, %v1103
        %v1454 = vsub.f32 %v1406, %v1104
        %v1455 = vsub.f32 %v1407, %v1105
        %v1456 = vsub.f32 %v1408, %v1106
        %v1457 = vsub.f32 %v1409, %v1107
        %v1458 = vsub.f32 %v1410, %v1108
        %v1459 = vsub.f32 %v1411, %v1109
        %v1460 = vsub.f32 %v1412, %v1110
        %v1461 = vsub.f32 %v1413, %v1111
        %v1462 = vsub.f32 %v1414, %v1112
        %v1463 = vsub.f32 %v1415, %v1113
        %v1464 = vsub.f32 %v1416, %v1114
        %v1465 = vsub.f32 %v1417, %v1115
        %v1466 = vsub.f32 %v1418, %v1116
        %v1467 = vsub.f32 %v1419, %v1117
        %v1468 = vmul.f32 %v1436, %v1452
        %v1469 = vmul.f32 %v1437, %v1453
        %v1470 = vmul.f32 %v1438, %v1454
        %v1471 = vmul.f32 %v1439, %v1455
        %v1472 = vmul.f32 %v1440, %v1456
        %v1473 = vmul.f32 %v1441, %v1457
        %v1474 = vmul.f32 %v1442, %v1458
        %v1475 = vmul.f32 %v1443, %v1459
        %v1476 = vmul.f32 %v1444, %v1460
        %v1477 = vmul.f32 %v1445, %v1461
        %v1478 = vmul.f32 %v1446, %v1462
        %v1479 = vmul.f32 %v1447, %v1463
        %v1480 = vmul.f32 %v1448, %v1464
        %v1481 = vmul.f32 %v1449, %v1465
        %v1482 = vmul.f32 %v1450, %v1466
        %v1483 = vmul.f32 %v1451, %v1467
        %v1484 = vadd.f32 %v1102, %v1468
        %v1485 = vadd.f32 %v1103, %v1469
        %v1486 = vadd.f32 %v1104, %v1470
        %v1487 = vadd.f32 %v1105, %v1471
        %v1488 = vadd.f32 %v1106, %v1472
        %v1489 = vadd.f32 %v1107, %v1473
        %v1490 = vadd.f32 %v1108, %v1474
        %v1491 = vadd.f32 %v1109, %v1475
        %v1492 = vadd.f32 %v1110, %v1476
        %v1493 = vadd.f32 %v1111, %v1477
        %v1494 = vadd.f32 %v1112, %v1478
        %v1495 = vadd.f32 %v1113, %v1479
        %v1496 = vadd.f32 %v1114, %v1480
        %v1497 = vadd.f32 %v1115, %v1481
        %v1498 = vadd.f32 %v1116, %v1482
        %v1499 = vadd.f32 %v1117, %v1483
        %v1500 = vmul.f32 %v1484, %v325
        %v1501 = vmul.f32 %v1485, %v325
        %v1502 = vmul.f32 %v1486, %v329
        %v1503 = vmul.f32 %v1487, %v329
        %v1504 = vmul.f32 %v1488, %v333
        %v1505 = vmul.f32 %v1489, %v333
        %v1506 = vmul.f32 %v1490, %v337
        %v1507 = vmul.f32 %v1491, %v337
        %v1508 = vmul.f32 %v1492, %v341
        %v1509 = vmul.f32 %v1493, %v341
        %v1510 = vmul.f32 %v1494, %v345
        %v1511 = vmul.f32 %v1495, %v345
        %v1512 = vmul.f32 %v1496, %v349
        %v1513 = vmul.f32 %v1497, %v349
        %v1514 = vmul.f32 %v1498, %v353
        %v1515 = vmul.f32 %v1499, %v353
        %v1516 = vadd.f32 %v1500, %v357
        %v1517 = vadd.f32 %v1501, %v357
        %v1518 = vadd.f32 %v1502, %v361
        %v1519 = vadd.f32 %v1503, %v361
        %v1520 = vadd.f32 %v1504, %v365
        %v1521 = vadd.f32 %v1505, %v365
        %v1522 = vadd.f32 %v1506, %v369
        %v1523 = vadd.f32 %v1507, %v369
        %v1524 = vadd.f32 %v1508, %v373
        %v1525 = vadd.f32 %v1509, %v373
        %v1526 = vadd.f32 %v1510, %v377
        %v1527 = vadd.f32 %v1511, %v377
        %v1528 = vadd.f32 %v1512, %v381
        %v1529 = vadd.f32 %v1513, %v381
        %v1530 = vadd.f32 %v1514, %v385
        %v1531 = vadd.f32 %v1515, %v385
        %s1532 = scalar_lea.vmem %s224, 3
        %v1533 = vld [vmem:[%s1532] ss:$8 sm:$0x3]
        %v1535 = vlaneseq
        %v1536 = vshrl.u32 %v1535, 7
        %v1537 = vsub.s32 0, %v1536
        %v1538 = vrot.slane %v1533, %v1537
        %v1539 = vlaneseq
        %v1540 = vshrl.u32 %v1539, 7
        %v1541 = vsub.s32 1, %v1540
        %v1542 = vrot.slane %v1533, %v1541
        %v1545 = vmul.f32 %v405, %v1538
        %v1546 = vmul.f32 %v405, %v1542
        %v1547 = vmul.f32 %v409, %v1538
        %v1548 = vmul.f32 %v409, %v1542
        %v1549 = vmul.f32 %v413, %v1538
        %v1550 = vmul.f32 %v413, %v1542
        %v1551 = vmul.f32 %v417, %v1538
        %v1552 = vmul.f32 %v417, %v1542
        %v1553 = vmul.f32 %v421, %v1538
        %v1554 = vmul.f32 %v421, %v1542
        %v1555 = vmul.f32 %v425, %v1538
        %v1556 = vmul.f32 %v425, %v1542
        %v1557 = vmul.f32 %v429, %v1538
        %v1558 = vmul.f32 %v429, %v1542
        %v1559 = vmul.f32 %v433, %v1538
        %v1560 = vmul.f32 %v433, %v1542
        %v1561 = vmul.f32 %v437, %v1538
        %v1562 = vmul.f32 %v437, %v1542
        %v1563 = vmul.f32 %v441, %v1538
        %v1564 = vmul.f32 %v441, %v1542
        %v1565 = vmul.f32 %v445, %v1538
        %v1566 = vmul.f32 %v445, %v1542
        %v1567 = vmul.f32 %v449, %v1538
        %v1568 = vmul.f32 %v449, %v1542
        %v1569 = vmul.f32 %v453, %v1538
        %v1570 = vmul.f32 %v453, %v1542
        %v1571 = vmul.f32 %v457, %v1538
        %v1572 = vmul.f32 %v457, %v1542
        %v1573 = vmul.f32 %v461, %v1538
        %v1574 = vmul.f32 %v461, %v1542
        %v1575 = vmul.f32 %v465, %v1538
        %v1576 = vmul.f32 %v465, %v1542
        %1577 = vmatprep.subr.mxu0 0.0
        %1578 = vmatpush1.msra.mxu0 0.0
        %1579 = vmatprep.subr.mxu0 0.0
        %1580 = vmatpush1.msra.mxu0 0.0
        %1581 = vmatprep.subr.mxu0 0.0
        %1582 = vmatpush1.msra.mxu0 0.0
        %1583 = vmatprep.subr.mxu0 0.0
        %1584 = vmatpush1.msra.mxu0 0.0
        %1585 = vmatprep.subr.mxu0 0.0
        %1586 = vmatpush1.msra.mxu0 0.0
        %1587 = vmatprep.subr.mxu0 0.0
        %1588 = vmatpush1.msra.mxu0 0.0
        %1589 = vmatprep.subr.mxu0 0.0
        %1590 = vmatpush1.msra.mxu0 0.0
        %1591 = vmatprep.subr.mxu0 0.0
        %1592 = vmatpush1.msra.mxu0 0.0
        %1593 = vmatprep.subr.mxu0 %v1531
        %1594 = vmatpush1.msra.mxu0 %v1530
        %1595 = vmatprep.subr.mxu0 %v1529
        %1596 = vmatpush1.msra.mxu0 %v1528
        %1597 = vmatprep.subr.mxu0 %v1527
        %1598 = vmatpush1.msra.mxu0 %v1526
        %1599 = vmatprep.subr.mxu0 %v1525
        %1600 = vmatpush1.msra.mxu0 %v1524
        %1601 = vmatprep.subr.mxu0 %v1523
        %1602 = vmatpush1.msra.mxu0 %v1522
        %1603 = vmatprep.subr.mxu0 %v1521
        %1604 = vmatpush1.msra.mxu0 %v1520
        %1605 = vmatprep.subr.mxu0 %v1519
        %1606 = vmatpush1.msra.mxu0 %v1518
        %1607 = vmatprep.subr.mxu0 %v1517
        %1608 = vmatpush1.msra.mxu0 %v1516
        %1609 = vmatprep.subr.mxu0 0.0
        %1610 = vmatpush2.msra.mxu0 0.0
        %1611 = vmatprep.subr.mxu0 0.0
        %1612 = vmatpush2.msra.mxu0 0.0
        %1613 = vmatprep.subr.mxu0 0.0
        %1614 = vmatpush2.msra.mxu0 0.0
        %1615 = vmatprep.subr.mxu0 0.0
        %1616 = vmatpush2.msra.mxu0 0.0
        %1617 = vmatprep.subr.mxu0 0.0
        %1618 = vmatpush2.msra.mxu0 0.0
        %1619 = vmatprep.subr.mxu0 0.0
        %1620 = vmatpush2.msra.mxu0 0.0
        %1621 = vmatprep.subr.mxu0 0.0
        %1622 = vmatpush2.msra.mxu0 0.0
        %1623 = vmatprep.subr.mxu0 0.0
        %1624 = vmatpush2.msra.mxu0 0.0
        %1625 = vmatprep.subr.mxu0 0.0
        %1626 = vmatpush2.msra.mxu0 0.0
        %1627 = vmatprep.subr.mxu0 0.0
        %1628 = vmatpush2.msra.mxu0 0.0
        %1629 = vmatprep.subr.mxu0 0.0
        %1630 = vmatpush2.msra.mxu0 0.0
        %1631 = vmatprep.subr.mxu0 0.0
        %1632 = vmatpush2.msra.mxu0 0.0
        %1633 = vmatprep.subr.mxu0 0.0
        %1634 = vmatpush2.msra.mxu0 0.0
        %1635 = vmatprep.subr.mxu0 0.0
        %1636 = vmatpush2.msra.mxu0 0.0
        %1637 = vmatprep.subr.mxu0 0.0
        %1638 = vmatpush2.msra.mxu0 0.0
        %1639 = vmatprep.subr.mxu0 0.0
        %1640 = vmatpush2.msra.mxu0 0.0
        %1641 = vmatprep.mubr.f32.mxu0 0.0
        %1642 = vmatmul.mubr.f32.gmra.mxu0 %v702
        %v1643 = vpop.f32.mrf.mxu0
        %v1644 = vadd.f32 0.0, %v1643
        %v1645 = vpop.f32.mrf.mxu0
        %v1646 = vadd.f32 0.0, %v1645
        %1647 = vmatprep.mubr.f32.mxu0 0.0
        %1648 = vmatmul.mubr.f32.gmra.mxu0 %v705
        %v1649 = vpop.f32.mrf.mxu0
        %v1650 = vadd.f32 0.0, %v1649
        %v1651 = vpop.f32.mrf.mxu0
        %v1652 = vadd.f32 0.0, %v1651
        %1653 = vmatprep.mubr.f32.mxu0 0.0
        %1654 = vmatmul.mubr.f32.gmra.mxu0 %v708
        %v1655 = vpop.f32.mrf.mxu0
        %v1656 = vadd.f32 0.0, %v1655
        %v1657 = vpop.f32.mrf.mxu0
        %v1658 = vadd.f32 0.0, %v1657
        %1659 = vmatprep.mubr.f32.mxu0 0.0
        %1660 = vmatmul.mubr.f32.gmra.mxu0 %v711
        %v1661 = vpop.f32.mrf.mxu0
        %v1662 = vadd.f32 0.0, %v1661
        %v1663 = vpop.f32.mrf.mxu0
        %v1664 = vadd.f32 0.0, %v1663
        %1665 = vmatprep.mubr.f32.mxu0 0.0
        %1666 = vmatmul.mubr.f32.gmra.mxu0 %v714
        %v1667 = vpop.f32.mrf.mxu0
        %v1668 = vadd.f32 0.0, %v1667
        %v1669 = vpop.f32.mrf.mxu0
        %v1670 = vadd.f32 0.0, %v1669
        %1671 = vmatprep.mubr.f32.mxu0 0.0
        %1672 = vmatmul.mubr.f32.gmra.mxu0 %v717
        %v1673 = vpop.f32.mrf.mxu0
        %v1674 = vadd.f32 0.0, %v1673
        %v1675 = vpop.f32.mrf.mxu0
        %v1676 = vadd.f32 0.0, %v1675
        %1677 = vmatprep.mubr.f32.mxu0 0.0
        %1678 = vmatmul.mubr.f32.gmra.mxu0 %v720
        %v1679 = vpop.f32.mrf.mxu0
        %v1680 = vadd.f32 0.0, %v1679
        %v1681 = vpop.f32.mrf.mxu0
        %v1682 = vadd.f32 0.0, %v1681
        %1683 = vmatprep.mubr.f32.mxu0 0.0
        %1684 = vmatmul.mubr.f32.gmra.mxu0 %v723
        %v1685 = vpop.f32.mrf.mxu0
        %v1686 = vadd.f32 0.0, %v1685
        %v1687 = vpop.f32.mrf.mxu0
        %v1688 = vadd.f32 0.0, %v1687
        %1689 = vmatprep.mubr.f32.mxu0 0.0
        %1690 = vmatmul.mubr.f32.gmra.mxu0 %v726
        %v1691 = vpop.f32.mrf.mxu0
        %v1692 = vadd.f32 0.0, %v1691
        %v1693 = vpop.f32.mrf.mxu0
        %v1694 = vadd.f32 0.0, %v1693
        %1695 = vmatprep.mubr.f32.mxu0 0.0
        %1696 = vmatmul.mubr.f32.gmra.mxu0 %v729
        %v1697 = vpop.f32.mrf.mxu0
        %v1698 = vadd.f32 0.0, %v1697
        %v1699 = vpop.f32.mrf.mxu0
        %v1700 = vadd.f32 0.0, %v1699
        %1701 = vmatprep.mubr.f32.mxu0 0.0
        %1702 = vmatmul.mubr.f32.gmra.mxu0 %v732
        %v1703 = vpop.f32.mrf.mxu0
        %v1704 = vadd.f32 0.0, %v1703
        %v1705 = vpop.f32.mrf.mxu0
        %v1706 = vadd.f32 0.0, %v1705
        %1707 = vmatprep.mubr.f32.mxu0 0.0
        %1708 = vmatmul.mubr.f32.gmra.mxu0 %v735
        %v1709 = vpop.f32.mrf.mxu0
        %v1710 = vadd.f32 0.0, %v1709
        %v1711 = vpop.f32.mrf.mxu0
        %v1712 = vadd.f32 0.0, %v1711
        %1713 = vmatprep.mubr.f32.mxu0 0.0
        %1714 = vmatmul.mubr.f32.gmra.mxu0 %v738
        %v1715 = vpop.f32.mrf.mxu0
        %v1716 = vadd.f32 0.0, %v1715
        %v1717 = vpop.f32.mrf.mxu0
        %v1718 = vadd.f32 0.0, %v1717
        %1719 = vmatprep.mubr.f32.mxu0 0.0
        %1720 = vmatmul.mubr.f32.gmra.mxu0 %v741
        %v1721 = vpop.f32.mrf.mxu0
        %v1722 = vadd.f32 0.0, %v1721
        %v1723 = vpop.f32.mrf.mxu0
        %v1724 = vadd.f32 0.0, %v1723
        %1725 = vmatprep.mubr.f32.mxu0 0.0
        %1726 = vmatmul.mubr.f32.gmra.mxu0 %v744
        %v1727 = vpop.f32.mrf.mxu0
        %v1728 = vadd.f32 0.0, %v1727
        %v1729 = vpop.f32.mrf.mxu0
        %v1730 = vadd.f32 0.0, %v1729
        %1731 = vmatprep.mubr.f32.mxu0 0.0
        %1732 = vmatmul.mubr.f32.gmra.mxu0 %v747
        %v1733 = vpop.f32.mrf.mxu0
        %v1734 = vadd.f32 0.0, %v1733
        %v1735 = vpop.f32.mrf.mxu0
        %v1736 = vadd.f32 0.0, %v1735
        %1737 = vdwg.mxu0
        %v1738 = vadd.f32 %v1545, %v1644
        %v1739 = vadd.f32 %v1546, %v1646
        %v1740 = vadd.f32 %v1547, %v1650
        %v1741 = vadd.f32 %v1548, %v1652
        %v1742 = vadd.f32 %v1549, %v1656
        %v1743 = vadd.f32 %v1550, %v1658
        %v1744 = vadd.f32 %v1551, %v1662
        %v1745 = vadd.f32 %v1552, %v1664
        %v1746 = vadd.f32 %v1553, %v1668
        %v1747 = vadd.f32 %v1554, %v1670
        %v1748 = vadd.f32 %v1555, %v1674
        %v1749 = vadd.f32 %v1556, %v1676
        %v1750 = vadd.f32 %v1557, %v1680
        %v1751 = vadd.f32 %v1558, %v1682
        %v1752 = vadd.f32 %v1559, %v1686
        %v1753 = vadd.f32 %v1560, %v1688
        %v1754 = vadd.f32 %v1561, %v1692
        %v1755 = vadd.f32 %v1562, %v1694
        %v1756 = vadd.f32 %v1563, %v1698
        %v1757 = vadd.f32 %v1564, %v1700
        %v1758 = vadd.f32 %v1565, %v1704
        %v1759 = vadd.f32 %v1566, %v1706
        %v1760 = vadd.f32 %v1567, %v1710
        %v1761 = vadd.f32 %v1568, %v1712
        %v1762 = vadd.f32 %v1569, %v1716
        %v1763 = vadd.f32 %v1570, %v1718
        %v1764 = vadd.f32 %v1571, %v1722
        %v1765 = vadd.f32 %v1572, %v1724
        %v1766 = vadd.f32 %v1573, %v1728
        %v1767 = vadd.f32 %v1574, %v1730
        %v1768 = vadd.f32 %v1575, %v1734
        %v1769 = vadd.f32 %v1576, %v1736
        %v1770 = vadd.f32 %v1738, %v246
        %v1771 = vadd.f32 %v1739, %v246
        %v1772 = vadd.f32 %v1740, %v251
        %v1773 = vadd.f32 %v1741, %v251
        %v1774 = vadd.f32 %v1742, %v256
        %v1775 = vadd.f32 %v1743, %v256
        %v1776 = vadd.f32 %v1744, %v261
        %v1777 = vadd.f32 %v1745, %v261
        %v1778 = vadd.f32 %v1746, %v266
        %v1779 = vadd.f32 %v1747, %v266
        %v1780 = vadd.f32 %v1748, %v271
        %v1781 = vadd.f32 %v1749, %v271
        %v1782 = vadd.f32 %v1750, %v276
        %v1783 = vadd.f32 %v1751, %v276
        %v1784 = vadd.f32 %v1752, %v281
        %v1785 = vadd.f32 %v1753, %v281
        %v1786 = vadd.f32 %v1754, %v286
        %v1787 = vadd.f32 %v1755, %v286
        %v1788 = vadd.f32 %v1756, %v291
        %v1789 = vadd.f32 %v1757, %v291
        %v1790 = vadd.f32 %v1758, %v296
        %v1791 = vadd.f32 %v1759, %v296
        %v1792 = vadd.f32 %v1760, %v301
        %v1793 = vadd.f32 %v1761, %v301
        %v1794 = vadd.f32 %v1762, %v306
        %v1795 = vadd.f32 %v1763, %v306
        %v1796 = vadd.f32 %v1764, %v311
        %v1797 = vadd.f32 %v1765, %v311
        %v1798 = vadd.f32 %v1766, %v316
        %v1799 = vadd.f32 %v1767, %v316
        %v1800 = vadd.f32 %v1768, %v321
        %v1801 = vadd.f32 %v1769, %v321
        %v1802 = vtanh.pop %v1770
        %v1803 = vtanh.pop %v1771
        %v1804 = vtanh.pop %v1772
        %v1805 = vtanh.pop %v1773
        %v1806 = vtanh.pop %v1774
        %v1807 = vtanh.pop %v1775
        %v1808 = vtanh.pop %v1776
        %v1809 = vtanh.pop %v1777
        %v1810 = vtanh.pop %v1778
        %v1811 = vtanh.pop %v1779
        %v1812 = vtanh.pop %v1780
        %v1813 = vtanh.pop %v1781
        %v1814 = vtanh.pop %v1782
        %v1815 = vtanh.pop %v1783
        %v1816 = vtanh.pop %v1784
        %v1817 = vtanh.pop %v1785
        %v1818 = vtanh.pop %v1786
        %v1819 = vtanh.pop %v1787
        %v1820 = vtanh.pop %v1788
        %v1821 = vtanh.pop %v1789
        %v1822 = vtanh.pop %v1790
        %v1823 = vtanh.pop %v1791
        %v1824 = vtanh.pop %v1792
        %v1825 = vtanh.pop %v1793
        %v1826 = vtanh.pop %v1794
        %v1827 = vtanh.pop %v1795
        %v1828 = vtanh.pop %v1796
        %v1829 = vtanh.pop %v1797
        %v1830 = vtanh.pop %v1798
        %v1831 = vtanh.pop %v1799
        %v1832 = vtanh.pop %v1800
        %v1833 = vtanh.pop %v1801
        %v1834 = vmul.f32 %v1802, 0.5
        %v1835 = vmul.f32 %v1803, 0.5
        %v1836 = vmul.f32 %v1804, 0.5
        %v1837 = vmul.f32 %v1805, 0.5
        %v1838 = vmul.f32 %v1806, 0.5
        %v1839 = vmul.f32 %v1807, 0.5
        %v1840 = vmul.f32 %v1808, 0.5
        %v1841 = vmul.f32 %v1809, 0.5
        %v1842 = vmul.f32 %v1810, 0.5
        %v1843 = vmul.f32 %v1811, 0.5
        %v1844 = vmul.f32 %v1812, 0.5
        %v1845 = vmul.f32 %v1813, 0.5
        %v1846 = vmul.f32 %v1814, 0.5
        %v1847 = vmul.f32 %v1815, 0.5
        %v1848 = vmul.f32 %v1816, 0.5
        %v1849 = vmul.f32 %v1817, 0.5
        %v1850 = vadd.f32 %v1834, 0.5
        %v1851 = vadd.f32 %v1835, 0.5
        %v1852 = vadd.f32 %v1836, 0.5
        %v1853 = vadd.f32 %v1837, 0.5
        %v1854 = vadd.f32 %v1838, 0.5
        %v1855 = vadd.f32 %v1839, 0.5
        %v1856 = vadd.f32 %v1840, 0.5
        %v1857 = vadd.f32 %v1841, 0.5
        %v1858 = vadd.f32 %v1842, 0.5
        %v1859 = vadd.f32 %v1843, 0.5
        %v1860 = vadd.f32 %v1844, 0.5
        %v1861 = vadd.f32 %v1845, 0.5
        %v1862 = vadd.f32 %v1846, 0.5
        %v1863 = vadd.f32 %v1847, 0.5
        %v1864 = vadd.f32 %v1848, 0.5
        %v1865 = vadd.f32 %v1849, 0.5
        %v1866 = vsub.f32 %v1818, %v1516
        %v1867 = vsub.f32 %v1819, %v1517
        %v1868 = vsub.f32 %v1820, %v1518
        %v1869 = vsub.f32 %v1821, %v1519
        %v1870 = vsub.f32 %v1822, %v1520
        %v1871 = vsub.f32 %v1823, %v1521
        %v1872 = vsub.f32 %v1824, %v1522
        %v1873 = vsub.f32 %v1825, %v1523
        %v1874 = vsub.f32 %v1826, %v1524
        %v1875 = vsub.f32 %v1827, %v1525
        %v1876 = vsub.f32 %v1828, %v1526
        %v1877 = vsub.f32 %v1829, %v1527
        %v1878 = vsub.f32 %v1830, %v1528
        %v1879 = vsub.f32 %v1831, %v1529
        %v1880 = vsub.f32 %v1832, %v1530
        %v1881 = vsub.f32 %v1833, %v1531
        %v1882 = vmul.f32 %v1850, %v1866
        %v1883 = vmul.f32 %v1851, %v1867
        %v1884 = vmul.f32 %v1852, %v1868
        %v1885 = vmul.f32 %v1853, %v1869
        %v1886 = vmul.f32 %v1854, %v1870
        %v1887 = vmul.f32 %v1855, %v1871
        %v1888 = vmul.f32 %v1856, %v1872
        %v1889 = vmul.f32 %v1857, %v1873
        %v1890 = vmul.f32 %v1858, %v1874
        %v1891 = vmul.f32 %v1859, %v1875
        %v1892 = vmul.f32 %v1860, %v1876
        %v1893 = vmul.f32 %v1861, %v1877
        %v1894 = vmul.f32 %v1862, %v1878
        %v1895 = vmul.f32 %v1863, %v1879
        %v1896 = vmul.f32 %v1864, %v1880
        %v1897 = vmul.f32 %v1865, %v1881
        %v1898 = vadd.f32 %v1516, %v1882
        %v1899 = vadd.f32 %v1517, %v1883
        %v1900 = vadd.f32 %v1518, %v1884
        %v1901 = vadd.f32 %v1519, %v1885
        %v1902 = vadd.f32 %v1520, %v1886
        %v1903 = vadd.f32 %v1521, %v1887
        %v1904 = vadd.f32 %v1522, %v1888
        %v1905 = vadd.f32 %v1523, %v1889
        %v1906 = vadd.f32 %v1524, %v1890
        %v1907 = vadd.f32 %v1525, %v1891
        %v1908 = vadd.f32 %v1526, %v1892
        %v1909 = vadd.f32 %v1527, %v1893
        %v1910 = vadd.f32 %v1528, %v1894
        %v1911 = vadd.f32 %v1529, %v1895
        %v1912 = vadd.f32 %v1530, %v1896
        %v1913 = vadd.f32 %v1531, %v1897
        %v1914 = vmul.f32 %v1898, %v325
        %v1915 = vmul.f32 %v1899, %v325
        %v1916 = vmul.f32 %v1900, %v329
        %v1917 = vmul.f32 %v1901, %v329
        %v1918 = vmul.f32 %v1902, %v333
        %v1919 = vmul.f32 %v1903, %v333
        %v1920 = vmul.f32 %v1904, %v337
        %v1921 = vmul.f32 %v1905, %v337
        %v1922 = vmul.f32 %v1906, %v341
        %v1923 = vmul.f32 %v1907, %v341
        %v1924 = vmul.f32 %v1908, %v345
        %v1925 = vmul.f32 %v1909, %v345
        %v1926 = vmul.f32 %v1910, %v349
        %v1927 = vmul.f32 %v1911, %v349
        %v1928 = vmul.f32 %v1912, %v353
        %v1929 = vmul.f32 %v1913, %v353
        %v1930 = vadd.f32 %v1914, %v357
        %v1931 = vadd.f32 %v1915, %v357
        %v1932 = vadd.f32 %v1916, %v361
        %v1933 = vadd.f32 %v1917, %v361
        %v1934 = vadd.f32 %v1918, %v365
        %v1935 = vadd.f32 %v1919, %v365
        %v1936 = vadd.f32 %v1920, %v369
        %v1937 = vadd.f32 %v1921, %v369
        %v1938 = vadd.f32 %v1922, %v373
        %v1939 = vadd.f32 %v1923, %v373
        %v1940 = vadd.f32 %v1924, %v377
        %v1941 = vadd.f32 %v1925, %v377
        %v1942 = vadd.f32 %v1926, %v381
        %v1943 = vadd.f32 %v1927, %v381
        %v1944 = vadd.f32 %v1928, %v385
        %v1945 = vadd.f32 %v1929, %v385
        %s1946 = scalar_lea.vmem %s224, 4
        %v1947 = vld [vmem:[%s1946] ss:$8 sm:$0x3]
        %v1949 = vlaneseq
        %v1950 = vshrl.u32 %v1949, 7
        %v1951 = vsub.s32 0, %v1950
        %v1952 = vrot.slane %v1947, %v1951
        %v1953 = vlaneseq
        %v1954 = vshrl.u32 %v1953, 7
        %v1955 = vsub.s32 1, %v1954
        %v1956 = vrot.slane %v1947, %v1955
        %v1959 = vmul.f32 %v405, %v1952
        %v1960 = vmul.f32 %v405, %v1956
        %v1961 = vmul.f32 %v409, %v1952
        %v1962 = vmul.f32 %v409, %v1956
        %v1963 = vmul.f32 %v413, %v1952
        %v1964 = vmul.f32 %v413, %v1956
        %v1965 = vmul.f32 %v417, %v1952
        %v1966 = vmul.f32 %v417, %v1956
        %v1967 = vmul.f32 %v421, %v1952
        %v1968 = vmul.f32 %v421, %v1956
        %v1969 = vmul.f32 %v425, %v1952
        %v1970 = vmul.f32 %v425, %v1956
        %v1971 = vmul.f32 %v429, %v1952
        %v1972 = vmul.f32 %v429, %v1956
        %v1973 = vmul.f32 %v433, %v1952
        %v1974 = vmul.f32 %v433, %v1956
        %v1975 = vmul.f32 %v437, %v1952
        %v1976 = vmul.f32 %v437, %v1956
        %v1977 = vmul.f32 %v441, %v1952
        %v1978 = vmul.f32 %v441, %v1956
        %v1979 = vmul.f32 %v445, %v1952
        %v1980 = vmul.f32 %v445, %v1956
        %v1981 = vmul.f32 %v449, %v1952
        %v1982 = vmul.f32 %v449, %v1956
        %v1983 = vmul.f32 %v453, %v1952
        %v1984 = vmul.f32 %v453, %v1956
        %v1985 = vmul.f32 %v457, %v1952
        %v1986 = vmul.f32 %v457, %v1956
        %v1987 = vmul.f32 %v461, %v1952
        %v1988 = vmul.f32 %v461, %v1956
        %v1989 = vmul.f32 %v465, %v1952
        %v1990 = vmul.f32 %v465, %v1956
        %1991 = vmatprep.subr.mxu0 0.0
        %1992 = vmatpush1.msra.mxu0 0.0
        %1993 = vmatprep.subr.mxu0 0.0
        %1994 = vmatpush1.msra.mxu0 0.0
        %1995 = vmatprep.subr.mxu0 0.0
        %1996 = vmatpush1.msra.mxu0 0.0
        %1997 = vmatprep.subr.mxu0 0.0
        %1998 = vmatpush1.msra.mxu0 0.0
        %1999 = vmatprep.subr.mxu0 0.0
        %2000 = vmatpush1.msra.mxu0 0.0
        %2001 = vmatprep.subr.mxu0 0.0
        %2002 = vmatpush1.msra.mxu0 0.0
        %2003 = vmatprep.subr.mxu0 0.0
        %2004 = vmatpush1.msra.mxu0 0.0
        %2005 = vmatprep.subr.mxu0 0.0
        %2006 = vmatpush1.msra.mxu0 0.0
        %2007 = vmatprep.subr.mxu0 %v1945
        %2008 = vmatpush1.msra.mxu0 %v1944
        %2009 = vmatprep.subr.mxu0 %v1943
        %2010 = vmatpush1.msra.mxu0 %v1942
        %2011 = vmatprep.subr.mxu0 %v1941
        %2012 = vmatpush1.msra.mxu0 %v1940
        %2013 = vmatprep.subr.mxu0 %v1939
        %2014 = vmatpush1.msra.mxu0 %v1938
        %2015 = vmatprep.subr.mxu0 %v1937
        %2016 = vmatpush1.msra.mxu0 %v1936
        %2017 = vmatprep.subr.mxu0 %v1935
        %2018 = vmatpush1.msra.mxu0 %v1934
        %2019 = vmatprep.subr.mxu0 %v1933
        %2020 = vmatpush1.msra.mxu0 %v1932
        %2021 = vmatprep.subr.mxu0 %v1931
        %2022 = vmatpush1.msra.mxu0 %v1930
        %2023 = vmatprep.subr.mxu0 0.0
        %2024 = vmatpush2.msra.mxu0 0.0
        %2025 = vmatprep.subr.mxu0 0.0
        %2026 = vmatpush2.msra.mxu0 0.0
        %2027 = vmatprep.subr.mxu0 0.0
        %2028 = vmatpush2.msra.mxu0 0.0
        %2029 = vmatprep.subr.mxu0 0.0
        %2030 = vmatpush2.msra.mxu0 0.0
        %2031 = vmatprep.subr.mxu0 0.0
        %2032 = vmatpush2.msra.mxu0 0.0
        %2033 = vmatprep.subr.mxu0 0.0
        %2034 = vmatpush2.msra.mxu0 0.0
        %2035 = vmatprep.subr.mxu0 0.0
        %2036 = vmatpush2.msra.mxu0 0.0
        %2037 = vmatprep.subr.mxu0 0.0
        %2038 = vmatpush2.msra.mxu0 0.0
        %2039 = vmatprep.subr.mxu0 0.0
        %2040 = vmatpush2.msra.mxu0 0.0
        %2041 = vmatprep.subr.mxu0 0.0
        %2042 = vmatpush2.msra.mxu0 0.0
        %2043 = vmatprep.subr.mxu0 0.0
        %2044 = vmatpush2.msra.mxu0 0.0
        %2045 = vmatprep.subr.mxu0 0.0
        %2046 = vmatpush2.msra.mxu0 0.0
        %2047 = vmatprep.subr.mxu0 0.0
        %2048 = vmatpush2.msra.mxu0 0.0
        %2049 = vmatprep.subr.mxu0 0.0
        %2050 = vmatpush2.msra.mxu0 0.0
        %2051 = vmatprep.subr.mxu0 0.0
        %2052 = vmatpush2.msra.mxu0 0.0
        %2053 = vmatprep.subr.mxu0 0.0
        %2054 = vmatpush2.msra.mxu0 0.0
        %2055 = vmatprep.mubr.f32.mxu0 0.0
        %2056 = vmatmul.mubr.f32.gmra.mxu0 %v702
        %v2057 = vpop.f32.mrf.mxu0
        %v2058 = vadd.f32 0.0, %v2057
        %v2059 = vpop.f32.mrf.mxu0
        %v2060 = vadd.f32 0.0, %v2059
        %2061 = vmatprep.mubr.f32.mxu0 0.0
        %2062 = vmatmul.mubr.f32.gmra.mxu0 %v705
        %v2063 = vpop.f32.mrf.mxu0
        %v2064 = vadd.f32 0.0, %v2063
        %v2065 = vpop.f32.mrf.mxu0
        %v2066 = vadd.f32 0.0, %v2065
        %2067 = vmatprep.mubr.f32.mxu0 0.0
        %2068 = vmatmul.mubr.f32.gmra.mxu0 %v708
        %v2069 = vpop.f32.mrf.mxu0
        %v2070 = vadd.f32 0.0, %v2069
        %v2071 = vpop.f32.mrf.mxu0
        %v2072 = vadd.f32 0.0, %v2071
        %2073 = vmatprep.mubr.f32.mxu0 0.0
        %2074 = vmatmul.mubr.f32.gmra.mxu0 %v711
        %v2075 = vpop.f32.mrf.mxu0
        %v2076 = vadd.f32 0.0, %v2075
        %v2077 = vpop.f32.mrf.mxu0
        %v2078 = vadd.f32 0.0, %v2077
        %2079 = vmatprep.mubr.f32.mxu0 0.0
        %2080 = vmatmul.mubr.f32.gmra.mxu0 %v714
        %v2081 = vpop.f32.mrf.mxu0
        %v2082 = vadd.f32 0.0, %v2081
        %v2083 = vpop.f32.mrf.mxu0
        %v2084 = vadd.f32 0.0, %v2083
        %2085 = vmatprep.mubr.f32.mxu0 0.0
        %2086 = vmatmul.mubr.f32.gmra.mxu0 %v717
        %v2087 = vpop.f32.mrf.mxu0
        %v2088 = vadd.f32 0.0, %v2087
        %v2089 = vpop.f32.mrf.mxu0
        %v2090 = vadd.f32 0.0, %v2089
        %2091 = vmatprep.mubr.f32.mxu0 0.0
        %2092 = vmatmul.mubr.f32.gmra.mxu0 %v720
        %v2093 = vpop.f32.mrf.mxu0
        %v2094 = vadd.f32 0.0, %v2093
        %v2095 = vpop.f32.mrf.mxu0
        %v2096 = vadd.f32 0.0, %v2095
        %2097 = vmatprep.mubr.f32.mxu0 0.0
        %2098 = vmatmul.mubr.f32.gmra.mxu0 %v723
        %v2099 = vpop.f32.mrf.mxu0
        %v2100 = vadd.f32 0.0, %v2099
        %v2101 = vpop.f32.mrf.mxu0
        %v2102 = vadd.f32 0.0, %v2101
        %2103 = vmatprep.mubr.f32.mxu0 0.0
        %2104 = vmatmul.mubr.f32.gmra.mxu0 %v726
        %v2105 = vpop.f32.mrf.mxu0
        %v2106 = vadd.f32 0.0, %v2105
        %v2107 = vpop.f32.mrf.mxu0
        %v2108 = vadd.f32 0.0, %v2107
        %2109 = vmatprep.mubr.f32.mxu0 0.0
        %2110 = vmatmul.mubr.f32.gmra.mxu0 %v729
        %v2111 = vpop.f32.mrf.mxu0
        %v2112 = vadd.f32 0.0, %v2111
        %v2113 = vpop.f32.mrf.mxu0
        %v2114 = vadd.f32 0.0, %v2113
        %2115 = vmatprep.mubr.f32.mxu0 0.0
        %2116 = vmatmul.mubr.f32.gmra.mxu0 %v732
        %v2117 = vpop.f32.mrf.mxu0
        %v2118 = vadd.f32 0.0, %v2117
        %v2119 = vpop.f32.mrf.mxu0
        %v2120 = vadd.f32 0.0, %v2119
        %2121 = vmatprep.mubr.f32.mxu0 0.0
        %2122 = vmatmul.mubr.f32.gmra.mxu0 %v735
        %v2123 = vpop.f32.mrf.mxu0
        %v2124 = vadd.f32 0.0, %v2123
        %v2125 = vpop.f32.mrf.mxu0
        %v2126 = vadd.f32 0.0, %v2125
        %2127 = vmatprep.mubr.f32.mxu0 0.0
        %2128 = vmatmul.mubr.f32.gmra.mxu0 %v738
        %v2129 = vpop.f32.mrf.mxu0
        %v2130 = vadd.f32 0.0, %v2129
        %v2131 = vpop.f32.mrf.mxu0
        %v2132 = vadd.f32 0.0, %v2131
        %2133 = vmatprep.mubr.f32.mxu0 0.0
        %2134 = vmatmul.mubr.f32.gmra.mxu0 %v741
        %v2135 = vpop.f32.mrf.mxu0
        %v2136 = vadd.f32 0.0, %v2135
        %v2137 = vpop.f32.mrf.mxu0
        %v2138 = vadd.f32 0.0, %v2137
        %2139 = vmatprep.mubr.f32.mxu0 0.0
        %2140 = vmatmul.mubr.f32.gmra.mxu0 %v744
        %v2141 = vpop.f32.mrf.mxu0
        %v2142 = vadd.f32 0.0, %v2141
        %v2143 = vpop.f32.mrf.mxu0
        %v2144 = vadd.f32 0.0, %v2143
        %2145 = vmatprep.mubr.f32.mxu0 0.0
        %2146 = vmatmul.mubr.f32.gmra.mxu0 %v747
        %v2147 = vpop.f32.mrf.mxu0
        %v2148 = vadd.f32 0.0, %v2147
        %v2149 = vpop.f32.mrf.mxu0
        %v2150 = vadd.f32 0.0, %v2149
        %2151 = vdwg.mxu0
        %v2152 = vadd.f32 %v1959, %v2058
        %v2153 = vadd.f32 %v1960, %v2060
        %v2154 = vadd.f32 %v1961, %v2064
        %v2155 = vadd.f32 %v1962, %v2066
        %v2156 = vadd.f32 %v1963, %v2070
        %v2157 = vadd.f32 %v1964, %v2072
        %v2158 = vadd.f32 %v1965, %v2076
        %v2159 = vadd.f32 %v1966, %v2078
        %v2160 = vadd.f32 %v1967, %v2082
        %v2161 = vadd.f32 %v1968, %v2084
        %v2162 = vadd.f32 %v1969, %v2088
        %v2163 = vadd.f32 %v1970, %v2090
        %v2164 = vadd.f32 %v1971, %v2094
        %v2165 = vadd.f32 %v1972, %v2096
        %v2166 = vadd.f32 %v1973, %v2100
        %v2167 = vadd.f32 %v1974, %v2102
        %v2168 = vadd.f32 %v1975, %v2106
        %v2169 = vadd.f32 %v1976, %v2108
        %v2170 = vadd.f32 %v1977, %v2112
        %v2171 = vadd.f32 %v1978, %v2114
        %v2172 = vadd.f32 %v1979, %v2118
        %v2173 = vadd.f32 %v1980, %v2120
        %v2174 = vadd.f32 %v1981, %v2124
        %v2175 = vadd.f32 %v1982, %v2126
        %v2176 = vadd.f32 %v1983, %v2130
        %v2177 = vadd.f32 %v1984, %v2132
        %v2178 = vadd.f32 %v1985, %v2136
        %v2179 = vadd.f32 %v1986, %v2138
        %v2180 = vadd.f32 %v1987, %v2142
        %v2181 = vadd.f32 %v1988, %v2144
        %v2182 = vadd.f32 %v1989, %v2148
        %v2183 = vadd.f32 %v1990, %v2150
        %v2184 = vadd.f32 %v2152, %v246
        %v2185 = vadd.f32 %v2153, %v246
        %v2186 = vadd.f32 %v2154, %v251
        %v2187 = vadd.f32 %v2155, %v251
        %v2188 = vadd.f32 %v2156, %v256
        %v2189 = vadd.f32 %v2157, %v256
        %v2190 = vadd.f32 %v2158, %v261
        %v2191 = vadd.f32 %v2159, %v261
        %v2192 = vadd.f32 %v2160, %v266
        %v2193 = vadd.f32 %v2161, %v266
        %v2194 = vadd.f32 %v2162, %v271
        %v2195 = vadd.f32 %v2163, %v271
        %v2196 = vadd.f32 %v2164, %v276
        %v2197 = vadd.f32 %v2165, %v276
        %v2198 = vadd.f32 %v2166, %v281
        %v2199 = vadd.f32 %v2167, %v281
        %v2200 = vadd.f32 %v2168, %v286
        %v2201 = vadd.f32 %v2169, %v286
        %v2202 = vadd.f32 %v2170, %v291
        %v2203 = vadd.f32 %v2171, %v291
        %v2204 = vadd.f32 %v2172, %v296
        %v2205 = vadd.f32 %v2173, %v296
        %v2206 = vadd.f32 %v2174, %v301
        %v2207 = vadd.f32 %v2175, %v301
        %v2208 = vadd.f32 %v2176, %v306
        %v2209 = vadd.f32 %v2177, %v306
        %v2210 = vadd.f32 %v2178, %v311
        %v2211 = vadd.f32 %v2179, %v311
        %v2212 = vadd.f32 %v2180, %v316
        %v2213 = vadd.f32 %v2181, %v316
        %v2214 = vadd.f32 %v2182, %v321
        %v2215 = vadd.f32 %v2183, %v321
        %v2216 = vtanh.pop %v2184
        %v2217 = vtanh.pop %v2185
        %v2218 = vtanh.pop %v2186
        %v2219 = vtanh.pop %v2187
        %v2220 = vtanh.pop %v2188
        %v2221 = vtanh.pop %v2189
        %v2222 = vtanh.pop %v2190
        %v2223 = vtanh.pop %v2191
        %v2224 = vtanh.pop %v2192
        %v2225 = vtanh.pop %v2193
        %v2226 = vtanh.pop %v2194
        %v2227 = vtanh.pop %v2195
        %v2228 = vtanh.pop %v2196
        %v2229 = vtanh.pop %v2197
        %v2230 = vtanh.pop %v2198
        %v2231 = vtanh.pop %v2199
        %v2232 = vtanh.pop %v2200
        %v2233 = vtanh.pop %v2201
        %v2234 = vtanh.pop %v2202
        %v2235 = vtanh.pop %v2203
        %v2236 = vtanh.pop %v2204
        %v2237 = vtanh.pop %v2205
        %v2238 = vtanh.pop %v2206
        %v2239 = vtanh.pop %v2207
        %v2240 = vtanh.pop %v2208
        %v2241 = vtanh.pop %v2209
        %v2242 = vtanh.pop %v2210
        %v2243 = vtanh.pop %v2211
        %v2244 = vtanh.pop %v2212
        %v2245 = vtanh.pop %v2213
        %v2246 = vtanh.pop %v2214
        %v2247 = vtanh.pop %v2215
        %v2248 = vmul.f32 %v2216, 0.5
        %v2249 = vmul.f32 %v2217, 0.5
        %v2250 = vmul.f32 %v2218, 0.5
        %v2251 = vmul.f32 %v2219, 0.5
        %v2252 = vmul.f32 %v2220, 0.5
        %v2253 = vmul.f32 %v2221, 0.5
        %v2254 = vmul.f32 %v2222, 0.5
        %v2255 = vmul.f32 %v2223, 0.5
        %v2256 = vmul.f32 %v2224, 0.5
        %v2257 = vmul.f32 %v2225, 0.5
        %v2258 = vmul.f32 %v2226, 0.5
        %v2259 = vmul.f32 %v2227, 0.5
        %v2260 = vmul.f32 %v2228, 0.5
        %v2261 = vmul.f32 %v2229, 0.5
        %v2262 = vmul.f32 %v2230, 0.5
        %v2263 = vmul.f32 %v2231, 0.5
        %v2264 = vadd.f32 %v2248, 0.5
        %v2265 = vadd.f32 %v2249, 0.5
        %v2266 = vadd.f32 %v2250, 0.5
        %v2267 = vadd.f32 %v2251, 0.5
        %v2268 = vadd.f32 %v2252, 0.5
        %v2269 = vadd.f32 %v2253, 0.5
        %v2270 = vadd.f32 %v2254, 0.5
        %v2271 = vadd.f32 %v2255, 0.5
        %v2272 = vadd.f32 %v2256, 0.5
        %v2273 = vadd.f32 %v2257, 0.5
        %v2274 = vadd.f32 %v2258, 0.5
        %v2275 = vadd.f32 %v2259, 0.5
        %v2276 = vadd.f32 %v2260, 0.5
        %v2277 = vadd.f32 %v2261, 0.5
        %v2278 = vadd.f32 %v2262, 0.5
        %v2279 = vadd.f32 %v2263, 0.5
        %v2280 = vsub.f32 %v2232, %v1930
        %v2281 = vsub.f32 %v2233, %v1931
        %v2282 = vsub.f32 %v2234, %v1932
        %v2283 = vsub.f32 %v2235, %v1933
        %v2284 = vsub.f32 %v2236, %v1934
        %v2285 = vsub.f32 %v2237, %v1935
        %v2286 = vsub.f32 %v2238, %v1936
        %v2287 = vsub.f32 %v2239, %v1937
        %v2288 = vsub.f32 %v2240, %v1938
        %v2289 = vsub.f32 %v2241, %v1939
        %v2290 = vsub.f32 %v2242, %v1940
        %v2291 = vsub.f32 %v2243, %v1941
        %v2292 = vsub.f32 %v2244, %v1942
        %v2293 = vsub.f32 %v2245, %v1943
        %v2294 = vsub.f32 %v2246, %v1944
        %v2295 = vsub.f32 %v2247, %v1945
        %v2296 = vmul.f32 %v2264, %v2280
        %v2297 = vmul.f32 %v2265, %v2281
        %v2298 = vmul.f32 %v2266, %v2282
        %v2299 = vmul.f32 %v2267, %v2283
        %v2300 = vmul.f32 %v2268, %v2284
        %v2301 = vmul.f32 %v2269, %v2285
        %v2302 = vmul.f32 %v2270, %v2286
        %v2303 = vmul.f32 %v2271, %v2287
        %v2304 = vmul.f32 %v2272, %v2288
        %v2305 = vmul.f32 %v2273, %v2289
        %v2306 = vmul.f32 %v2274, %v2290
        %v2307 = vmul.f32 %v2275, %v2291
        %v2308 = vmul.f32 %v2276, %v2292
        %v2309 = vmul.f32 %v2277, %v2293
        %v2310 = vmul.f32 %v2278, %v2294
        %v2311 = vmul.f32 %v2279, %v2295
        %v2312 = vadd.f32 %v1930, %v2296
        %v2313 = vadd.f32 %v1931, %v2297
        %v2314 = vadd.f32 %v1932, %v2298
        %v2315 = vadd.f32 %v1933, %v2299
        %v2316 = vadd.f32 %v1934, %v2300
        %v2317 = vadd.f32 %v1935, %v2301
        %v2318 = vadd.f32 %v1936, %v2302
        %v2319 = vadd.f32 %v1937, %v2303
        %v2320 = vadd.f32 %v1938, %v2304
        %v2321 = vadd.f32 %v1939, %v2305
        %v2322 = vadd.f32 %v1940, %v2306
        %v2323 = vadd.f32 %v1941, %v2307
        %v2324 = vadd.f32 %v1942, %v2308
        %v2325 = vadd.f32 %v1943, %v2309
        %v2326 = vadd.f32 %v1944, %v2310
        %v2327 = vadd.f32 %v1945, %v2311
        %v2328 = vmul.f32 %v2312, %v325
        %v2329 = vmul.f32 %v2313, %v325
        %v2330 = vmul.f32 %v2314, %v329
        %v2331 = vmul.f32 %v2315, %v329
        %v2332 = vmul.f32 %v2316, %v333
        %v2333 = vmul.f32 %v2317, %v333
        %v2334 = vmul.f32 %v2318, %v337
        %v2335 = vmul.f32 %v2319, %v337
        %v2336 = vmul.f32 %v2320, %v341
        %v2337 = vmul.f32 %v2321, %v341
        %v2338 = vmul.f32 %v2322, %v345
        %v2339 = vmul.f32 %v2323, %v345
        %v2340 = vmul.f32 %v2324, %v349
        %v2341 = vmul.f32 %v2325, %v349
        %v2342 = vmul.f32 %v2326, %v353
        %v2343 = vmul.f32 %v2327, %v353
        %v2344 = vadd.f32 %v2328, %v357
        %v2345 = vadd.f32 %v2329, %v357
        %v2346 = vadd.f32 %v2330, %v361
        %v2347 = vadd.f32 %v2331, %v361
        %v2348 = vadd.f32 %v2332, %v365
        %v2349 = vadd.f32 %v2333, %v365
        %v2350 = vadd.f32 %v2334, %v369
        %v2351 = vadd.f32 %v2335, %v369
        %v2352 = vadd.f32 %v2336, %v373
        %v2353 = vadd.f32 %v2337, %v373
        %v2354 = vadd.f32 %v2338, %v377
        %v2355 = vadd.f32 %v2339, %v377
        %v2356 = vadd.f32 %v2340, %v381
        %v2357 = vadd.f32 %v2341, %v381
        %v2358 = vadd.f32 %v2342, %v385
        %v2359 = vadd.f32 %v2343, %v385
        %v2360 = vld [vmem:[%s2] sm:$0xff]
        %v2361 = vld [vmem:[%s2 + $0x8] sm:$0xff]
        %v2362 = vld [vmem:[%s2 + $0x10] sm:$0xff]
        %v2363 = vld [vmem:[%s2 + $0x18] sm:$0xff]
        %v2364 = vld [vmem:[%s2 + $0x20] sm:$0xff]
        %v2365 = vld [vmem:[%s2 + $0x28] sm:$0xff]
        %v2366 = vld [vmem:[%s2 + $0x30] sm:$0xff]
        %v2367 = vld [vmem:[%s2 + $0x38] sm:$0xff]
        %v2368 = vld [vmem:[%s2 + $0x40] sm:$0xff]
        %v2369 = vld [vmem:[%s2 + $0x48] sm:$0xff]
        %v2370 = vld [vmem:[%s2 + $0x50] sm:$0xff]
        %v2371 = vld [vmem:[%s2 + $0x58] sm:$0xff]
        %v2372 = vld [vmem:[%s2 + $0x60] sm:$0xff]
        %v2373 = vld [vmem:[%s2 + $0x68] sm:$0xff]
        %v2374 = vld [vmem:[%s2 + $0x70] sm:$0xff]
        %v2375 = vld [vmem:[%s2 + $0x78] sm:$0xff]
        %2376 = vset.pattern.permute.xlu0 2
        %2377 = vperm.xlu0 %2376, %v227
        %v2378 = vpop.permute.xlu0 %2377
        %2380 = vset.pattern.permute.xlu0 2
        %2381 = vperm.xlu0 %2380, %v228
        %v2382 = vpop.permute.xlu0 %2381
        %2384 = vset.pattern.permute.xlu0 2
        %2385 = vperm.xlu0 %2384, %v229
        %v2386 = vpop.permute.xlu0 %2385
        %2388 = vset.pattern.permute.xlu0 2
        %2389 = vperm.xlu0 %2388, %v230
        %v2390 = vpop.permute.xlu0 %2389
        %2392 = vset.pattern.permute.xlu0 2
        %2393 = vperm.xlu0 %2392, %v231
        %v2394 = vpop.permute.xlu0 %2393
        %2396 = vset.pattern.permute.xlu0 2
        %2397 = vperm.xlu0 %2396, %v232
        %v2398 = vpop.permute.xlu0 %2397
        %2400 = vset.pattern.permute.xlu0 2
        %2401 = vperm.xlu0 %2400, %v233
        %v2402 = vpop.permute.xlu0 %2401
        %2404 = vset.pattern.permute.xlu0 2
        %2405 = vperm.xlu0 %2404, %v234
        %v2406 = vpop.permute.xlu0 %2405
        %2408 = vset.pattern.permute.xlu0 2
        %2409 = vperm.xlu0 %2408, %v235
        %v2410 = vpop.permute.xlu0 %2409
        %2412 = vset.pattern.permute.xlu0 2
        %2413 = vperm.xlu0 %2412, %v236
        %v2414 = vpop.permute.xlu0 %2413
        %2416 = vset.pattern.permute.xlu0 2
        %2417 = vperm.xlu0 %2416, %v237
        %v2418 = vpop.permute.xlu0 %2417
        %2420 = vset.pattern.permute.xlu0 2
        %2421 = vperm.xlu0 %2420, %v238
        %v2422 = vpop.permute.xlu0 %2421
        %2424 = vset.pattern.permute.xlu0 2
        %2425 = vperm.xlu0 %2424, %v239
        %v2426 = vpop.permute.xlu0 %2425
        %2428 = vset.pattern.permute.xlu0 2
        %2429 = vperm.xlu0 %2428, %v240
        %v2430 = vpop.permute.xlu0 %2429
        %2432 = vset.pattern.permute.xlu0 2
        %2433 = vperm.xlu0 %2432, %v241
        %v2434 = vpop.permute.xlu0 %2433
        %2436 = vset.pattern.permute.xlu0 2
        %2437 = vperm.xlu0 %2436, %v242
        %v2438 = vpop.permute.xlu0 %2437
        %v2441 = vsel %vm700, %v2360, 0
        %v2444 = vsel %vm700, %v2361, 0
        %v2447 = vsel %vm700, %v2362, 0
        %v2450 = vsel %vm700, %v2363, 0
        %v2453 = vsel %vm700, %v2364, 0
        %v2456 = vsel %vm700, %v2365, 0
        %v2459 = vsel %vm700, %v2366, 0
        %v2462 = vsel %vm700, %v2367, 0
        %v2465 = vsel %vm700, %v2368, 0
        %v2468 = vsel %vm700, %v2369, 0
        %v2471 = vsel %vm700, %v2370, 0
        %v2474 = vsel %vm700, %v2371, 0
        %v2477 = vsel %vm700, %v2372, 0
        %v2480 = vsel %vm700, %v2373, 0
        %v2483 = vsel %vm700, %v2374, 0
        %v2486 = vsel %vm700, %v2375, 0
        %2488 = vmatprep.subr.mxu0 0.0
        %2489 = vmatpush1.msra.mxu0 0.0
        %2490 = vmatprep.subr.mxu0 0.0
        %2491 = vmatpush1.msra.mxu0 0.0
        %2492 = vmatprep.subr.mxu0 0.0
        %2493 = vmatpush1.msra.mxu0 0.0
        %2494 = vmatprep.subr.mxu0 0.0
        %2495 = vmatpush1.msra.mxu0 0.0
        %2496 = vmatprep.subr.mxu0 0.0
        %2497 = vmatpush1.msra.mxu0 0.0
        %2498 = vmatprep.subr.mxu0 0.0
        %2499 = vmatpush1.msra.mxu0 0.0
        %2500 = vmatprep.subr.mxu0 0.0
        %2501 = vmatpush1.msra.mxu0 0.0
        %2502 = vmatprep.subr.mxu0 0.0
        %2503 = vmatpush1.msra.mxu0 0.0
        %2504 = vmatprep.subr.mxu0 %v2359
        %2505 = vmatpush1.msra.mxu0 %v2358
        %2506 = vmatprep.subr.mxu0 %v2357
        %2507 = vmatpush1.msra.mxu0 %v2356
        %2508 = vmatprep.subr.mxu0 %v2355
        %2509 = vmatpush1.msra.mxu0 %v2354
        %2510 = vmatprep.subr.mxu0 %v2353
        %2511 = vmatpush1.msra.mxu0 %v2352
        %2512 = vmatprep.subr.mxu0 %v2351
        %2513 = vmatpush1.msra.mxu0 %v2350
        %2514 = vmatprep.subr.mxu0 %v2349
        %2515 = vmatpush1.msra.mxu0 %v2348
        %2516 = vmatprep.subr.mxu0 %v2347
        %2517 = vmatpush1.msra.mxu0 %v2346
        %2518 = vmatprep.subr.mxu0 %v2345
        %2519 = vmatpush1.msra.mxu0 %v2344
        %2520 = vmatprep.subr.mxu0 0.0
        %2521 = vmatpush2.msra.mxu0 0.0
        %2522 = vmatprep.subr.mxu0 0.0
        %2523 = vmatpush2.msra.mxu0 0.0
        %2524 = vmatprep.subr.mxu0 0.0
        %2525 = vmatpush2.msra.mxu0 0.0
        %2526 = vmatprep.subr.mxu0 0.0
        %2527 = vmatpush2.msra.mxu0 0.0
        %2528 = vmatprep.subr.mxu0 0.0
        %2529 = vmatpush2.msra.mxu0 0.0
        %2530 = vmatprep.subr.mxu0 0.0
        %2531 = vmatpush2.msra.mxu0 0.0
        %2532 = vmatprep.subr.mxu0 0.0
        %2533 = vmatpush2.msra.mxu0 0.0
        %2534 = vmatprep.subr.mxu0 0.0
        %2535 = vmatpush2.msra.mxu0 0.0
        %2536 = vmatprep.subr.mxu0 0.0
        %2537 = vmatpush2.msra.mxu0 0.0
        %2538 = vmatprep.subr.mxu0 0.0
        %2539 = vmatpush2.msra.mxu0 0.0
        %2540 = vmatprep.subr.mxu0 0.0
        %2541 = vmatpush2.msra.mxu0 0.0
        %2542 = vmatprep.subr.mxu0 0.0
        %2543 = vmatpush2.msra.mxu0 0.0
        %2544 = vmatprep.subr.mxu0 0.0
        %2545 = vmatpush2.msra.mxu0 0.0
        %2546 = vmatprep.subr.mxu0 0.0
        %2547 = vmatpush2.msra.mxu0 0.0
        %2548 = vmatprep.subr.mxu0 0.0
        %2549 = vmatpush2.msra.mxu0 0.0
        %2550 = vmatprep.subr.mxu0 0.0
        %2551 = vmatpush2.msra.mxu0 0.0
        %2552 = vmatprep.mubr.f32.mxu0 0.0
        %2553 = vmatmul.mubr.f32.gmra.mxu0 %v2441
        %v2554 = vpop.f32.mrf.mxu0
        %v2555 = vadd.f32 %v2378, %v2554
        %v2556 = vpop.f32.mrf.mxu0
        %v2557 = vadd.f32 %v2378, %v2556
        %2558 = vmatprep.mubr.f32.mxu0 0.0
        %2559 = vmatmul.mubr.f32.gmra.mxu0 %v2444
        %v2560 = vpop.f32.mrf.mxu0
        %v2561 = vadd.f32 %v2382, %v2560
        %v2562 = vpop.f32.mrf.mxu0
        %v2563 = vadd.f32 %v2382, %v2562
        %2564 = vmatprep.mubr.f32.mxu0 0.0
        %2565 = vmatmul.mubr.f32.gmra.mxu0 %v2447
        %v2566 = vpop.f32.mrf.mxu0
        %v2567 = vadd.f32 %v2386, %v2566
        %v2568 = vpop.f32.mrf.mxu0
        %v2569 = vadd.f32 %v2386, %v2568
        %2570 = vmatprep.mubr.f32.mxu0 0.0
        %2571 = vmatmul.mubr.f32.gmra.mxu0 %v2450
        %v2572 = vpop.f32.mrf.mxu0
        %v2573 = vadd.f32 %v2390, %v2572
        %v2574 = vpop.f32.mrf.mxu0
        %v2575 = vadd.f32 %v2390, %v2574
        %2576 = vmatprep.mubr.f32.mxu0 0.0
        %2577 = vmatmul.mubr.f32.gmra.mxu0 %v2453
        %v2578 = vpop.f32.mrf.mxu0
        %v2579 = vadd.f32 %v2394, %v2578
        %v2580 = vpop.f32.mrf.mxu0
        %v2581 = vadd.f32 %v2394, %v2580
        %2582 = vmatprep.mubr.f32.mxu0 0.0
        %2583 = vmatmul.mubr.f32.gmra.mxu0 %v2456
        %v2584 = vpop.f32.mrf.mxu0
        %v2585 = vadd.f32 %v2398, %v2584
        %v2586 = vpop.f32.mrf.mxu0
        %v2587 = vadd.f32 %v2398, %v2586
        %2588 = vmatprep.mubr.f32.mxu0 0.0
        %2589 = vmatmul.mubr.f32.gmra.mxu0 %v2459
        %v2590 = vpop.f32.mrf.mxu0
        %v2591 = vadd.f32 %v2402, %v2590
        %v2592 = vpop.f32.mrf.mxu0
        %v2593 = vadd.f32 %v2402, %v2592
        %2594 = vmatprep.mubr.f32.mxu0 0.0
        %2595 = vmatmul.mubr.f32.gmra.mxu0 %v2462
        %v2596 = vpop.f32.mrf.mxu0
        %v2597 = vadd.f32 %v2406, %v2596
        %v2598 = vpop.f32.mrf.mxu0
        %v2599 = vadd.f32 %v2406, %v2598
        %2600 = vmatprep.mubr.f32.mxu0 0.0
        %2601 = vmatmul.mubr.f32.gmra.mxu0 %v2465
        %v2602 = vpop.f32.mrf.mxu0
        %v2603 = vadd.f32 %v2410, %v2602
        %v2604 = vpop.f32.mrf.mxu0
        %v2605 = vadd.f32 %v2410, %v2604
        %2606 = vmatprep.mubr.f32.mxu0 0.0
        %2607 = vmatmul.mubr.f32.gmra.mxu0 %v2468
        %v2608 = vpop.f32.mrf.mxu0
        %v2609 = vadd.f32 %v2414, %v2608
        %v2610 = vpop.f32.mrf.mxu0
        %v2611 = vadd.f32 %v2414, %v2610
        %2612 = vmatprep.mubr.f32.mxu0 0.0
        %2613 = vmatmul.mubr.f32.gmra.mxu0 %v2471
        %v2614 = vpop.f32.mrf.mxu0
        %v2615 = vadd.f32 %v2418, %v2614
        %v2616 = vpop.f32.mrf.mxu0
        %v2617 = vadd.f32 %v2418, %v2616
        %2618 = vmatprep.mubr.f32.mxu0 0.0
        %2619 = vmatmul.mubr.f32.gmra.mxu0 %v2474
        %v2620 = vpop.f32.mrf.mxu0
        %v2621 = vadd.f32 %v2422, %v2620
        %v2622 = vpop.f32.mrf.mxu0
        %v2623 = vadd.f32 %v2422, %v2622
        %2624 = vmatprep.mubr.f32.mxu0 0.0
        %2625 = vmatmul.mubr.f32.gmra.mxu0 %v2477
        %v2626 = vpop.f32.mrf.mxu0
        %v2627 = vadd.f32 %v2426, %v2626
        %v2628 = vpop.f32.mrf.mxu0
        %v2629 = vadd.f32 %v2426, %v2628
        %2630 = vmatprep.mubr.f32.mxu0 0.0
        %2631 = vmatmul.mubr.f32.gmra.mxu0 %v2480
        %v2632 = vpop.f32.mrf.mxu0
        %v2633 = vadd.f32 %v2430, %v2632
        %v2634 = vpop.f32.mrf.mxu0
        %v2635 = vadd.f32 %v2430, %v2634
        %2636 = vmatprep.mubr.f32.mxu0 0.0
        %2637 = vmatmul.mubr.f32.gmra.mxu0 %v2483
        %v2638 = vpop.f32.mrf.mxu0
        %v2639 = vadd.f32 %v2434, %v2638
        %v2640 = vpop.f32.mrf.mxu0
        %v2641 = vadd.f32 %v2434, %v2640
        %2642 = vmatprep.mubr.f32.mxu0 0.0
        %2643 = vmatmul.mubr.f32.gmra.mxu0 %v2486
        %v2644 = vpop.f32.mrf.mxu0
        %v2645 = vadd.f32 %v2438, %v2644
        %v2646 = vpop.f32.mrf.mxu0
        %v2647 = vadd.f32 %v2438, %v2646
        %2648 = vdwg.mxu0
        %v2649 = vtanh.pop %v2555
        %v2650 = vtanh.pop %v2557
        %v2651 = vtanh.pop %v2561
        %v2652 = vtanh.pop %v2563
        %v2653 = vtanh.pop %v2567
        %v2654 = vtanh.pop %v2569
        %v2655 = vtanh.pop %v2573
        %v2656 = vtanh.pop %v2575
        %v2657 = vtanh.pop %v2579
        %v2658 = vtanh.pop %v2581
        %v2659 = vtanh.pop %v2585
        %v2660 = vtanh.pop %v2587
        %v2661 = vtanh.pop %v2591
        %v2662 = vtanh.pop %v2593
        %v2663 = vtanh.pop %v2597
        %v2664 = vtanh.pop %v2599
        %v2665 = vtanh.pop %v2603
        %v2666 = vtanh.pop %v2605
        %v2667 = vtanh.pop %v2609
        %v2668 = vtanh.pop %v2611
        %v2669 = vtanh.pop %v2615
        %v2670 = vtanh.pop %v2617
        %v2671 = vtanh.pop %v2621
        %v2672 = vtanh.pop %v2623
        %v2673 = vtanh.pop %v2627
        %v2674 = vtanh.pop %v2629
        %v2675 = vtanh.pop %v2633
        %v2676 = vtanh.pop %v2635
        %v2677 = vtanh.pop %v2639
        %v2678 = vtanh.pop %v2641
        %v2679 = vtanh.pop %v2645
        %v2680 = vtanh.pop %v2647
        %v2681 = vmul.f32 %v2649, 0.5
        %v2682 = vmul.f32 %v2650, 0.5
        %v2683 = vmul.f32 %v2651, 0.5
        %v2684 = vmul.f32 %v2652, 0.5
        %v2685 = vmul.f32 %v2653, 0.5
        %v2686 = vmul.f32 %v2654, 0.5
        %v2687 = vmul.f32 %v2655, 0.5
        %v2688 = vmul.f32 %v2656, 0.5
        %v2689 = vmul.f32 %v2657, 0.5
        %v2690 = vmul.f32 %v2658, 0.5
        %v2691 = vmul.f32 %v2659, 0.5
        %v2692 = vmul.f32 %v2660, 0.5
        %v2693 = vmul.f32 %v2661, 0.5
        %v2694 = vmul.f32 %v2662, 0.5
        %v2695 = vmul.f32 %v2663, 0.5
        %v2696 = vmul.f32 %v2664, 0.5
        %v2697 = vadd.f32 %v2681, 0.5
        %v2698 = vadd.f32 %v2682, 0.5
        %v2699 = vadd.f32 %v2683, 0.5
        %v2700 = vadd.f32 %v2684, 0.5
        %v2701 = vadd.f32 %v2685, 0.5
        %v2702 = vadd.f32 %v2686, 0.5
        %v2703 = vadd.f32 %v2687, 0.5
        %v2704 = vadd.f32 %v2688, 0.5
        %v2705 = vadd.f32 %v2689, 0.5
        %v2706 = vadd.f32 %v2690, 0.5
        %v2707 = vadd.f32 %v2691, 0.5
        %v2708 = vadd.f32 %v2692, 0.5
        %v2709 = vadd.f32 %v2693, 0.5
        %v2710 = vadd.f32 %v2694, 0.5
        %v2711 = vadd.f32 %v2695, 0.5
        %v2712 = vadd.f32 %v2696, 0.5
        %v2713 = vsub.f32 %v2665, %v2344
        %v2714 = vsub.f32 %v2666, %v2345
        %v2715 = vsub.f32 %v2667, %v2346
        %v2716 = vsub.f32 %v2668, %v2347
        %v2717 = vsub.f32 %v2669, %v2348
        %v2718 = vsub.f32 %v2670, %v2349
        %v2719 = vsub.f32 %v2671, %v2350
        %v2720 = vsub.f32 %v2672, %v2351
        %v2721 = vsub.f32 %v2673, %v2352
        %v2722 = vsub.f32 %v2674, %v2353
        %v2723 = vsub.f32 %v2675, %v2354
        %v2724 = vsub.f32 %v2676, %v2355
        %v2725 = vsub.f32 %v2677, %v2356
        %v2726 = vsub.f32 %v2678, %v2357
        %v2727 = vsub.f32 %v2679, %v2358
        %v2728 = vsub.f32 %v2680, %v2359
        %v2729 = vmul.f32 %v2697, %v2713
        %v2730 = vmul.f32 %v2698, %v2714
        %v2731 = vmul.f32 %v2699, %v2715
        %v2732 = vmul.f32 %v2700, %v2716
        %v2733 = vmul.f32 %v2701, %v2717
        %v2734 = vmul.f32 %v2702, %v2718
        %v2735 = vmul.f32 %v2703, %v2719
        %v2736 = vmul.f32 %v2704, %v2720
        %v2737 = vmul.f32 %v2705, %v2721
        %v2738 = vmul.f32 %v2706, %v2722
        %v2739 = vmul.f32 %v2707, %v2723
        %v2740 = vmul.f32 %v2708, %v2724
        %v2741 = vmul.f32 %v2709, %v2725
        %v2742 = vmul.f32 %v2710, %v2726
        %v2743 = vmul.f32 %v2711, %v2727
        %v2744 = vmul.f32 %v2712, %v2728
        %v2745 = vadd.f32 %v2344, %v2729
        %v2746 = vadd.f32 %v2345, %v2730
        %v2747 = vadd.f32 %v2346, %v2731
        %v2748 = vadd.f32 %v2347, %v2732
        %v2749 = vadd.f32 %v2348, %v2733
        %v2750 = vadd.f32 %v2349, %v2734
        %v2751 = vadd.f32 %v2350, %v2735
        %v2752 = vadd.f32 %v2351, %v2736
        %v2753 = vadd.f32 %v2352, %v2737
        %v2754 = vadd.f32 %v2353, %v2738
        %v2755 = vadd.f32 %v2354, %v2739
        %v2756 = vadd.f32 %v2355, %v2740
        %v2757 = vadd.f32 %v2356, %v2741
        %v2758 = vadd.f32 %v2357, %v2742
        %v2759 = vadd.f32 %v2358, %v2743
        %v2760 = vadd.f32 %v2359, %v2744
        %2761 = vset.pattern.permute.xlu0 3
        %2762 = vperm.xlu0 %2761, %v227
        %v2763 = vpop.permute.xlu0 %2762
        %2765 = vset.pattern.permute.xlu0 3
        %2766 = vperm.xlu0 %2765, %v228
        %v2767 = vpop.permute.xlu0 %2766
        %2769 = vset.pattern.permute.xlu0 3
        %2770 = vperm.xlu0 %2769, %v229
        %v2771 = vpop.permute.xlu0 %2770
        %2773 = vset.pattern.permute.xlu0 3
        %2774 = vperm.xlu0 %2773, %v230
        %v2775 = vpop.permute.xlu0 %2774
        %2777 = vset.pattern.permute.xlu0 3
        %2778 = vperm.xlu0 %2777, %v231
        %v2779 = vpop.permute.xlu0 %2778
        %2781 = vset.pattern.permute.xlu0 3
        %2782 = vperm.xlu0 %2781, %v232
        %v2783 = vpop.permute.xlu0 %2782
        %2785 = vset.pattern.permute.xlu0 3
        %2786 = vperm.xlu0 %2785, %v233
        %v2787 = vpop.permute.xlu0 %2786
        %2789 = vset.pattern.permute.xlu0 3
        %2790 = vperm.xlu0 %2789, %v234
        %v2791 = vpop.permute.xlu0 %2790
        %v2793 = vmul.f32 %v2745, %v2763
        %v2794 = vmul.f32 %v2746, %v2763
        %v2795 = vmul.f32 %v2747, %v2767
        %v2796 = vmul.f32 %v2748, %v2767
        %v2797 = vmul.f32 %v2749, %v2771
        %v2798 = vmul.f32 %v2750, %v2771
        %v2799 = vmul.f32 %v2751, %v2775
        %v2800 = vmul.f32 %v2752, %v2775
        %v2801 = vmul.f32 %v2753, %v2779
        %v2802 = vmul.f32 %v2754, %v2779
        %v2803 = vmul.f32 %v2755, %v2783
        %v2804 = vmul.f32 %v2756, %v2783
        %v2805 = vmul.f32 %v2757, %v2787
        %v2806 = vmul.f32 %v2758, %v2787
        %v2807 = vmul.f32 %v2759, %v2791
        %v2808 = vmul.f32 %v2760, %v2791
        %2809 = vset.pattern.permute.xlu0 3
        %2810 = vperm.xlu0 %2809, %v235
        %v2811 = vpop.permute.xlu0 %2810
        %2813 = vset.pattern.permute.xlu0 3
        %2814 = vperm.xlu0 %2813, %v236
        %v2815 = vpop.permute.xlu0 %2814
        %2817 = vset.pattern.permute.xlu0 3
        %2818 = vperm.xlu0 %2817, %v237
        %v2819 = vpop.permute.xlu0 %2818
        %2821 = vset.pattern.permute.xlu0 3
        %2822 = vperm.xlu0 %2821, %v238
        %v2823 = vpop.permute.xlu0 %2822
        %2825 = vset.pattern.permute.xlu0 3
        %2826 = vperm.xlu0 %2825, %v239
        %v2827 = vpop.permute.xlu0 %2826
        %2829 = vset.pattern.permute.xlu0 3
        %2830 = vperm.xlu0 %2829, %v240
        %v2831 = vpop.permute.xlu0 %2830
        %2833 = vset.pattern.permute.xlu0 3
        %2834 = vperm.xlu0 %2833, %v241
        %v2835 = vpop.permute.xlu0 %2834
        %2837 = vset.pattern.permute.xlu0 3
        %2838 = vperm.xlu0 %2837, %v242
        %v2839 = vpop.permute.xlu0 %2838
        %v2841 = vadd.f32 %v2793, %v2811
        %v2842 = vadd.f32 %v2794, %v2811
        %v2843 = vadd.f32 %v2795, %v2815
        %v2844 = vadd.f32 %v2796, %v2815
        %v2845 = vadd.f32 %v2797, %v2819
        %v2846 = vadd.f32 %v2798, %v2819
        %v2847 = vadd.f32 %v2799, %v2823
        %v2848 = vadd.f32 %v2800, %v2823
        %v2849 = vadd.f32 %v2801, %v2827
        %v2850 = vadd.f32 %v2802, %v2827
        %v2851 = vadd.f32 %v2803, %v2831
        %v2852 = vadd.f32 %v2804, %v2831
        %v2853 = vadd.f32 %v2805, %v2835
        %v2854 = vadd.f32 %v2806, %v2835
        %v2855 = vadd.f32 %v2807, %v2839
        %v2856 = vadd.f32 %v2808, %v2839
        %v2857 = vadd.f32 %v2841, %v2344
        %v2858 = vadd.f32 %v2842, %v2345
        %v2859 = vadd.f32 %v2843, %v2346
        %v2860 = vadd.f32 %v2844, %v2347
        %v2861 = vadd.f32 %v2845, %v2348
        %v2862 = vadd.f32 %v2846, %v2349
        %v2863 = vadd.f32 %v2847, %v2350
        %v2864 = vadd.f32 %v2848, %v2351
        %v2865 = vadd.f32 %v2849, %v2352
        %v2866 = vadd.f32 %v2850, %v2353
        %v2867 = vadd.f32 %v2851, %v2354
        %v2868 = vadd.f32 %v2852, %v2355
        %v2869 = vadd.f32 %v2853, %v2356
        %v2870 = vadd.f32 %v2854, %v2357
        %v2871 = vadd.f32 %v2855, %v2358
        %v2872 = vadd.f32 %v2856, %v2359
        %2873 = vset.pattern.permute.xlu0 5
        %2874 = vperm.xlu0 %2873, %v227
        %v2875 = vpop.permute.xlu0 %2874
        %2877 = vset.pattern.permute.xlu0 5
        %2878 = vperm.xlu0 %2877, %v228
        %v2879 = vpop.permute.xlu0 %2878
        %2881 = vset.pattern.permute.xlu0 5
        %2882 = vperm.xlu0 %2881, %v229
        %v2883 = vpop.permute.xlu0 %2882
        %2885 = vset.pattern.permute.xlu0 5
        %2886 = vperm.xlu0 %2885, %v230
        %v2887 = vpop.permute.xlu0 %2886
        %2889 = vset.pattern.permute.xlu0 5
        %2890 = vperm.xlu0 %2889, %v231
        %v2891 = vpop.permute.xlu0 %2890
        %2893 = vset.pattern.permute.xlu0 5
        %2894 = vperm.xlu0 %2893, %v232
        %v2895 = vpop.permute.xlu0 %2894
        %2897 = vset.pattern.permute.xlu0 5
        %2898 = vperm.xlu0 %2897, %v233
        %v2899 = vpop.permute.xlu0 %2898
        %2901 = vset.pattern.permute.xlu0 5
        %2902 = vperm.xlu0 %2901, %v234
        %v2903 = vpop.permute.xlu0 %2902
        %v2905 = vmul.f32 %v2857, %v2875
        %v2906 = vmul.f32 %v2858, %v2875
        %v2907 = vmul.f32 %v2859, %v2879
        %v2908 = vmul.f32 %v2860, %v2879
        %v2909 = vmul.f32 %v2861, %v2883
        %v2910 = vmul.f32 %v2862, %v2883
        %v2911 = vmul.f32 %v2863, %v2887
        %v2912 = vmul.f32 %v2864, %v2887
        %v2913 = vmul.f32 %v2865, %v2891
        %v2914 = vmul.f32 %v2866, %v2891
        %v2915 = vmul.f32 %v2867, %v2895
        %v2916 = vmul.f32 %v2868, %v2895
        %v2917 = vmul.f32 %v2869, %v2899
        %v2918 = vmul.f32 %v2870, %v2899
        %v2919 = vmul.f32 %v2871, %v2903
        %v2920 = vmul.f32 %v2872, %v2903
        %v2921 = vadd.f32 %v2905, %v2907
        %v2922 = vadd.f32 %v2921, %v2909
        %v2923 = vadd.f32 %v2922, %v2911
        %v2924 = vadd.f32 %v2923, %v2913
        %v2925 = vadd.f32 %v2924, %v2915
        %v2926 = vadd.f32 %v2925, %v2917
        %v2927 = vadd.f32 %v2926, %v2919
        %v2928 = vrot.slane %v2927, 4
        %v2929 = vadd.f32 %v2927, %v2928
        %v2930 = vrot.slane %v2929, 2
        %v2931 = vadd.f32 %v2929, %v2930
        %v2932 = vrot.slane %v2931, 1
        %v2933 = vadd.f32 %v2931, %v2932
        %v2934 = vadd.f32 %v2906, %v2908
        %v2935 = vadd.f32 %v2934, %v2910
        %v2936 = vadd.f32 %v2935, %v2912
        %v2937 = vadd.f32 %v2936, %v2914
        %v2938 = vadd.f32 %v2937, %v2916
        %v2939 = vadd.f32 %v2938, %v2918
        %v2940 = vadd.f32 %v2939, %v2920
        %v2941 = vrot.slane %v2940, 4
        %v2942 = vadd.f32 %v2940, %v2941
        %v2943 = vrot.slane %v2942, 2
        %v2944 = vadd.f32 %v2942, %v2943
        %v2945 = vrot.slane %v2944, 1
        %v2946 = vadd.f32 %v2944, %v2945
        %2947 = vset.pattern.permute.xlu0 5
        %2948 = vperm.xlu0 %2947, %v235
        %v2949 = vpop.permute.xlu0 %2948
        %v2951 = vadd.f32 %v2933, %v2949
        %v2952 = vadd.f32 %v2946, %v2949
        %v2955 = vcombine.low %v2951, %v2952
        %v2957 = vunpack.c.l.s4 1966171168
        %v2958 = vunpack.c.0.s8 %v2957
        %v2959 = vlaneseq
        %v2960 = vshrl.u32 %v2959, 7
        %v2961 = vsub.s32 %v2958, %v2960
        %v2962 = vrot.slane %v2955, %v2961
        %v2964 = vunpack.c.l.s4 1966171168
        %v2965 = vunpack.c.0.s8 %v2964
        %v2966 = vlaneseq
        %v2967 = vshrl.u32 %v2966, 7
        %v2968 = vsub.s32 %v2965, %v2967
        %v2969 = vrot.slane %v2962, %v2968
        %v2971 = vlaneseq
        %vm2972 = vcmp.ge.s32.totalorder %v2971, 0
        %vm2973 = vcmp.lt.s32.totalorder %v2971, 256
        %vm2974 = vmand %vm2972, %vm2973
        %2975 = vst.msk [vmem:[%s215] sm:$0x3] %vm2974, %v2969
        %s2976 = sand.u32 %s131, 1
        %s2977 = scalar_lea.sflag [#allocation3], %s2976
        %s2978 = sand.u32 %s131, 1
        %s2979 = smul.addr %s2978, 2
        %s2980 = scalar_lea.vmem [#allocation2], %s2979
        // Predicated region
        $region37: #{tpu_custom_call.1} parent=35 // pred_check
          %p2981 = pneg %p141
        $region38: #{tpu_custom_call.1} parent=35 // pred_check_branch
          %2983 = sbr.rel (%p2981) target = $region40
        $region39: #{tpu_custom_call.1} parent=35 // pred_region
          %s2984 = smul.u32 2, %s23
          %s2986 = ssub.s32 32, 32
          %2987 = vsyncadd %s2977, %s2986
          %s2988 = smul.addr %s22, 2
          %s2989 = sadd.s32 %s2984, %s2988
          %s2990 = smul.addr %s2989, 16
          %s2991 = scalar_lea.hbm %s4, %s2990
          %s2993 = sshll.u32 %s2980, 4
          %s2994 = int_to_ptr.vmem [resolvable:$true] %s2993
          %2996 = dma.vmem_to_hbm [thread:$0]  %s2994, 32, %s2991, %s2977
        $region40: #{tpu_custom_call.1} parent=35 // pred_fallthru
          _
      $region36: #{tpu_custom_call.1} parent=5 // pred_fallthru
        _
      %p2997 = scmp.le.s32.totalorder 2, %s13
      // Predicated region
      $region41: #{tpu_custom_call.1} parent=5 // pred_check
        %p2998 = pneg %p2997
      $region42: #{tpu_custom_call.1} parent=5 // pred_check_branch
        %3000 = sbr.rel (%p2998) target = $region44
      $region43: #{tpu_custom_call.1} parent=5 // pred_region
        %s3001 = ssub.s32 %s13, 2
        // Predicated region
        $region45: #{tpu_custom_call.1} parent=43 // pred_check
          %p3002 = pneg %p147
        $region46: #{tpu_custom_call.1} parent=43 // pred_check_branch
          %3004 = sbr.rel (%p3002) target = $region48
        $region47: #{tpu_custom_call.1} parent=43 // pred_region
          %s3005 = sand.u32 %s132, 1
          %s3006 = scalar_lea.sflag [#allocation3], %s3005
          %s3007 = sand.u32 %s132, 1
          %s3008 = smul.addr %s3007, 2
          %s3009 = scalar_lea.vmem [#allocation2], %s3008
          %3010 = dma.done %s3006, 32
        $region48: #{tpu_custom_call.1} parent=43 // pred_fallthru
          _
      $region44: #{tpu_custom_call.1} parent=5 // pred_fallthru
        _
    $region6: #{tpu_custom_call.1} parent=1 // loop_footer
      %s17 = sadd.s32 1, %s13
    $region7: #{tpu_custom_call.1} parent=1 // loop_footer_branch
      %12 = sbr.rel target = $region3
    $region8: #{tpu_custom_call.1} parent=1 // loop_exit
      _
    %3011 = vsyncpa [#allocation3], 1
    %s3012 = scalar_lea.sflag [#allocation3], 1
    %3013 = vsyncpa %s3012, 1

</llo_original>
